<compile_context>
chip_gen: v6e
topology: v6e:2x2x1
jax: 0.10.0
libtpu: 0.0.40
codegen_flags: <defaults>
</compile_context>

<pallas_src>
import functools

import jax
import jax.numpy as jnp
from jax import lax
from jax.experimental import pallas as pl
from jax.experimental.pallas import tpu as pltpu

EPS = 1e-5


def _round_up(v, m):
    return -(-v // m) * m


# ----------------------------- Pallas kernel ------------------------------- #
def _repvgg_kernel(x_ref, w_ref, b_ref, o_ref, *, stride, tile_ho, wo, cin):
    """One batch image, one row-tile of the output.

    x_ref: (1, s, Hq, s, Wq, Cin)   bf16  phase-split padded NHWC input
                                          (VMEM-resident across the row-tile axis)
    w_ref: (9, Cout_p, Cin)         bf16  fused per-tap weights, tap t = kh*3+kw
    b_ref: (Cout_p, 1)              f32   fused bias
    o_ref: (1, Cout_p, tile_ho*wo)        output tile; lane axis = flattened HW
    """
    cout_p = o_ref.shape[1]
    tile_hw = tile_ho * wo
    i0 = pl.multiple_of(pl.program_id(1) * tile_ho, tile_ho)

    # Phase-split identity:  padded[s*i + kh, s*j + kw, c]
    #                      == xs[kh % s, i + kh//s, kw % s, j + kw//s, c]
    # so every tap is a unit-stride window of the VMEM-resident block.
    acc = jnp.zeros((cout_p, tile_hw), jnp.float32)
    for kh in range(3):
        ph, oh = kh % stride, kh // stride
        for pw in range(min(stride, 3)):
            kws = [kw for kw in range(3) if kw % stride == pw]
            if not kws:
                continue
            # One aligned (start-0, full-Wq) load per (kh, pw); the kw shifts
            # below are in-register slices, not misaligned ref loads.
            base = x_ref[0, ph, pl.ds(i0 + oh, tile_ho), pw, :, :]   # (tile_ho, Wq, Cin)
            for kw in kws:
                ow = kw // stride
                tap = base[:, ow:ow + wo, :].reshape(tile_hw, cin)   # (tile_hw, Cin)
                # f32-accumulated MXU dot, contraction over Cin only (no concat).
                acc = acc + lax.dot_general(
                    w_ref[kh * 3 + kw], tap,
                    dimension_numbers=(((1,), (1,)), ((), ())),
                    preferred_element_type=jnp.float32)              # (Cout_p, tile_hw)

    o_ref[0] = jnp.maximum(acc + b_ref[...], 0.0).astype(o_ref.dtype)


# ------------------------------ Parameter setup ---------------------------- #
def make_repvgg_params(key, cin, cout):
    ks = jax.random.split(key, 12)
    return {
        # conv weights, torch OIHW layout, no bias (bias=False in conv_bn)
        "w3": jax.random.normal(ks[0], (cout, cin, 3, 3), jnp.float32) * 0.1,
        "w1": jax.random.normal(ks[1], (cout, cin, 1, 1), jnp.float32) * 0.1,
        # BN params for the 3x3 branch
        "g3": jax.random.uniform(ks[2], (cout,), jnp.float32, 0.5, 1.5),
        "b3": jax.random.normal(ks[3], (cout,), jnp.float32) * 0.1,
        "m3": jax.random.normal(ks[4], (cout,), jnp.float32) * 0.1,
        "v3": jax.random.uniform(ks[5], (cout,), jnp.float32, 0.5, 1.5),
        # BN params for the 1x1 branch
        "g1": jax.random.uniform(ks[6], (cout,), jnp.float32, 0.5, 1.5),
        "b1": jax.random.normal(ks[7], (cout,), jnp.float32) * 0.1,
        "m1": jax.random.normal(ks[8], (cout,), jnp.float32) * 0.1,
        "v1": jax.random.uniform(ks[9], (cout,), jnp.float32, 0.5, 1.5),
    }


def fuse_repvgg_params(p, cout_p):
    """Fold BN into each conv, fold the 1x1 branch into the 3x3 center tap,
    and lay the result out as (9, Cout_p, Cin) bf16 + (Cout_p, 1) f32 bias."""
    s3 = p["g3"] / jnp.sqrt(p["v3"] + EPS)
    w3 = p["w3"] * s3[:, None, None, None]               # (Cout, Cin, 3, 3)
    bias3 = p["b3"] - p["m3"] * s3
    s1 = p["g1"] / jnp.sqrt(p["v1"] + EPS)
    w1 = p["w1"] * s1[:, None, None, None]               # (Cout, Cin, 1, 1)
    bias1 = p["b1"] - p["m1"] * s1

    w = w3.at[:, :, 1, 1].add(w1[:, :, 0, 0])            # exact RepVGG re-param
    bias = bias3 + bias1
    cout, cin = w.shape[0], w.shape[1]

    # (Cout, Cin, 3, 3) -> (3, 3, Cout, Cin) -> (9, Cout, Cin);  t = kh*3 + kw
    w9 = jnp.transpose(w, (2, 3, 0, 1)).reshape(9, cout, cin)
    w9 = jnp.pad(w9, ((0, 0), (0, cout_p - cout), (0, 0))).astype(jnp.bfloat16)
    bias = jnp.pad(bias, (0, cout_p - cout)).reshape(cout_p, 1).astype(jnp.float32)
    return w9, bias


def _pick_tile_ho(ho, wo, max_hw=2048):
    """Largest row-tile dividing Ho whose flattened size is a multiple of 128
    (lane-dense output stores) and <= max_hw; graceful fallbacks otherwise."""
    divs = [t for t in range(1, ho + 1) if ho % t == 0]
    aligned = [t for t in divs if (t * wo) % 128 == 0]
    pool = aligned if aligned else divs
    fit = [t for t in pool if t * wo <= max_hw]
    return max(fit) if fit else min(pool)


# ------------------------------- Wrapper ------------------------------------ #
def repvgg_forward(x_nchw, params, stride, out_dtype=jnp.float32):
    """Exact forward of the PyTorch RepVGG block.  x_nchw: (N, Cin, H, W) f32."""
    n, cin, h, w = x_nchw.shape
    cout = params["w3"].shape[0]
    s = int(stride)

    ho = (h - 1) // s + 1
    wo = (w - 1) // s + 1
    cout_p = _round_up(cout, 16)          # bf16 sublane pack of the weight tiles

    w9, bias = fuse_repvgg_params(params, cout_p)

    # Phase-split padded NHWC bf16 input:
    #   xs[n, ph, hq, pw, wq, c] = pad(x_nhwc)[n, s*hq + ph, s*wq + pw, c]
    # stride==1 is pad-only (no transpose pass).
    # TODO(synk): accept NHWC/bf16 activations from the producer (and fold the
    # stride-2 phase split there) to drop this extra HBM pass entirely.
    hq = ho - 1 + -(-3 // s)
    wq = wo - 1 + -(-3 // s)
    x = jnp.transpose(x_nchw, (0, 2, 3, 1)).astype(jnp.bfloat16)
    x = jnp.pad(x, ((0, 0), (1, s * hq - h - 1), (1, s * wq - w - 1), (0, 0)))
    if s == 1:
        xs = x.reshape(n, 1, hq, 1, wq, cin)
    else:
        xs = x.reshape(n, hq, s, wq, s, cin).transpose(0, 2, 1, 4, 3, 5)

    tile_ho = _pick_tile_ho(ho, wo)
    n_tiles = ho // tile_ho
    tile_hw = tile_ho * wo

    # Generation-aware VMEM budget: double-buffered input image / weights /
    # output tile, plus the in-kernel f32 accumulator and tap temporaries.
    # TODO(synk): add a row-tiled (halo) input fallback for layers whose whole
    # phase-split image does not fit the v7x 64 MiB VMEM.
    elt_out = jnp.dtype(out_dtype).itemsize
    in_bytes = s * hq * s * wq * cin * 2
    w_bytes = 9 * cout_p * cin * 2 + cout_p * 4
    out_bytes = cout_p * tile_hw * elt_out
    tmp_bytes = cout_p * tile_hw * 4 + 4 * tile_ho * wq * cin * 2
    need = 2 * (in_bytes + w_bytes + out_bytes) + tmp_bytes + (8 << 20)
    try:
        phys_vmem = int(getattr(pltpu.get_tpu_info(), "vmem_capacity_bytes",
                                128 << 20))
    except Exception:
        phys_vmem = 128 << 20
    cap = max(32 << 20, min(phys_vmem * 5 // 8, 96 << 20))
    vmem_bytes = int(min(max(need, 16 << 20), cap))

    kernel = functools.partial(
        _repvgg_kernel, stride=s, tile_ho=tile_ho, wo=wo, cin=cin)

    # TODO(synk): single-buffer the grid-invariant weight/bias blocks
    # (pipeline_mode=pl.Buffered(1)) once verified on the target jax version.
    out = pl.pallas_call(
        kernel,
        out_shape=jax.ShapeDtypeStruct((n, cout_p, ho * wo), out_dtype),
        grid_spec=pltpu.PrefetchScalarGridSpec(
            num_scalar_prefetch=0,
            grid=(n, n_tiles),
            in_specs=[
                pl.BlockSpec((1, s, hq, s, wq, cin),
                             lambda i, j: (i, 0, 0, 0, 0, 0)),
                pl.BlockSpec((9, cout_p, cin), lambda i, j: (0, 0, 0)),
                pl.BlockSpec((cout_p, 1), lambda i, j: (0, 0)),
            ],
            out_specs=pl.BlockSpec((1, cout_p, tile_hw),
                                   lambda i, j: (i, 0, j)),
        ),
        compiler_params=pltpu.CompilerParams(
            dimension_semantics=("parallel", "parallel"),
            vmem_limit_bytes=vmem_bytes,
        ),
    )(xs, w9, bias)

    # (N, Cout_p, Ho*Wo) -> NCHW via slice + reshape only (no transpose pass).
    return out[:, :cout, :].reshape(n, cout, ho, wo)


# ------------------------------ Pure-JAX reference -------------------------- #
def repvgg_reference(x_nchw, p, stride):
    def branch(wk, g, b, m, v, pad):
        y = lax.conv_general_dilated(
            x_nchw, wk, (stride, stride), pad,
            dimension_numbers=("NCHW", "OIHW", "NCHW"))
        scale = g / jnp.sqrt(v + EPS)
        return y * scale[None, :, None, None] + (b - m * scale)[None, :, None, None]

    y3 = branch(p["w3"], p["g3"], p["b3"], p["m3"], p["v3"], ((1, 1), (1, 1)))
    y1 = branch(p["w1"], p["g1"], p["b1"], p["m1"], p["v1"], ((0, 0), (0, 0)))
    return jnp.maximum(y3 + y1, 0.0)


# --------------------------------- Main ------------------------------------- #
if __name__ == "__main__":
    key = jax.random.PRNGKey(0)
    k_x1, k_x2, k_p = jax.random.split(key, 3)

    CIN, COUT = 8, 16
    params = make_repvgg_params(k_p, CIN, COUT)

    x16 = jax.random.normal(k_x1, (2, CIN, 16, 16), jnp.float32)
    x32 = jax.random.normal(k_x2, (1, CIN, 32, 32), jnp.float32)

    ok = True
    for x, stride in ((x16, 1), (x16, 2), (x32, 1), (x32, 2)):
        y = jax.block_until_ready(repvgg_forward(x, params, stride))
        y_ref = jax.block_until_ready(repvgg_reference(x, params, stride))
        if y.shape != y_ref.shape:
            ok = False
            print(f"SHAPE MISMATCH x={x.shape} stride={stride}: "
                  f"{y.shape} vs {y_ref.shape}")
        elif not jnp.allclose(y, y_ref, atol=5e-2, rtol=5e-2):
            ok = False
            print(f"MISMATCH x={x.shape} stride={stride}: "
                  f"max abs err {float(jnp.max(jnp.abs(y - y_ref))):.3e}")

    if ok:
        print("KERNEL_OK")
</pallas_src>

<mosaic_0001>
module attributes {stable_mosaic.version = 11 : i64} {
  func.func @_repvgg_kernel(%arg0: i32, %arg1: i32, %arg2: memref<1x1x18x1x18x8xbf16, #tpu.memory_space<vmem>>, %arg3: memref<9x16x8xbf16, #tpu.memory_space<vmem>>, %arg4: memref<16x1xf32, #tpu.memory_space<vmem>>, %arg5: memref<1x16x256xf32, #tpu.memory_space<vmem>>) attributes {dimension_semantics = [#tpu.dimension_semantics<parallel>, #tpu.dimension_semantics<parallel>], iteration_bounds = array<i64: 2, 1>, scalar_prefetch = 0 : i64, scratch_operands = 0 : i64, tpu.core_type = #tpu.core_type<tc>, window_params = [{transform_indices = @transform_0, window_bounds = array<i64: 1, 1, 18, 1, 18, 8>}, {pipeline_mode = #tpu.pipeline_mode<synchronous>, transform_indices = @transform_1, window_bounds = array<i64: 9, 16, 8>}, {pipeline_mode = #tpu.pipeline_mode<synchronous>, transform_indices = @transform_2, window_bounds = array<i64: 16, 1>}, {transform_indices = @transform_3, window_bounds = array<i64: 1, 16, 256>}]} {
    %c16_i32 = arith.constant 16 : i32
    %0 = arith.muli %arg1, %c16_i32 : i32
    %1 = tpu.assume_multiple %0, 16 : i32
    %cst = arith.constant 0.000000e+00 : f32
    %2 = vector.broadcast %cst : f32 to vector<16x256xf32>
    %c0_i32 = arith.constant 0 : i32
    %3 = arith.addi %1, %c0_i32 : i32
    %c0 = arith.constant 0 : index
    %c0_0 = arith.constant 0 : index
    %4 = arith.index_cast %3 : i32 to index
    %c0_1 = arith.constant 0 : index
    %c0_2 = arith.constant 0 : index
    %c0_3 = arith.constant 0 : index
    %5 = vector.load %arg2[%c0, %c0_0, %4, %c0_1, %c0_2, %c0_3] : memref<1x1x18x1x18x8xbf16, #tpu.memory_space<vmem>>, vector<1x1x16x1x18x8xbf16>
    %6 = vector.shape_cast %5 : vector<1x1x16x1x18x8xbf16> to vector<16x18x8xbf16>
    %7 = vector.extract_strided_slice %6 {offsets = [0, 0, 0], sizes = [16, 16, 8], strides = [1, 1, 1]} : vector<16x18x8xbf16> to vector<16x16x8xbf16>
    %8 = vector.shape_cast %7 : vector<16x16x8xbf16> to vector<256x8xbf16>
    %c0_4 = arith.constant 0 : index
    %c0_5 = arith.constant 0 : index
    %c0_6 = arith.constant 0 : index
    %9 = vector.load %arg3[%c0_4, %c0_5, %c0_6] : memref<9x16x8xbf16, #tpu.memory_space<vmem>>, vector<1x16x8xbf16>
    %10 = vector.shape_cast %9 : vector<1x16x8xbf16> to vector<16x8xbf16>
    %cst_7 = arith.constant dense<0.000000e+00> : vector<16x256xf32>
    %11 = tpu.matmul %10, %8, %cst_7 {dimension_numbers = #tpu.dot_dimension_numbers<[1], [1], [0], [0], [0, 0, 1, 0], [], []>} : vector<16x8xbf16>, vector<256x8xbf16>, vector<16x256xf32> -> vector<16x256xf32>
    %12 = arith.addf %2, %11 : vector<16x256xf32>
    %13 = vector.extract_strided_slice %6 {offsets = [0, 1, 0], sizes = [16, 16, 8], strides = [1, 1, 1]} : vector<16x18x8xbf16> to vector<16x16x8xbf16>
    %14 = vector.shape_cast %13 : vector<16x16x8xbf16> to vector<256x8xbf16>
    %c1 = arith.constant 1 : index
    %c0_8 = arith.constant 0 : index
    %c0_9 = arith.constant 0 : index
    %15 = vector.load %arg3[%c1, %c0_8, %c0_9] : memref<9x16x8xbf16, #tpu.memory_space<vmem>>, vector<1x16x8xbf16>
    %16 = vector.shape_cast %15 : vector<1x16x8xbf16> to vector<16x8xbf16>
    %cst_10 = arith.constant dense<0.000000e+00> : vector<16x256xf32>
    %17 = tpu.matmul %16, %14, %cst_10 {dimension_numbers = #tpu.dot_dimension_numbers<[1], [1], [0], [0], [0, 0, 1, 0], [], []>} : vector<16x8xbf16>, vector<256x8xbf16>, vector<16x256xf32> -> vector<16x256xf32>
    %18 = arith.addf %12, %17 : vector<16x256xf32>
    %19 = vector.extract_strided_slice %6 {offsets = [0, 2, 0], sizes = [16, 16, 8], strides = [1, 1, 1]} : vector<16x18x8xbf16> to vector<16x16x8xbf16>
    %20 = vector.shape_cast %19 : vector<16x16x8xbf16> to vector<256x8xbf16>
    %c2 = arith.constant 2 : index
    %c0_11 = arith.constant 0 : index
    %c0_12 = arith.constant 0 : index
    %21 = vector.load %arg3[%c2, %c0_11, %c0_12] : memref<9x16x8xbf16, #tpu.memory_space<vmem>>, vector<1x16x8xbf16>
    %22 = vector.shape_cast %21 : vector<1x16x8xbf16> to vector<16x8xbf16>
    %cst_13 = arith.constant dense<0.000000e+00> : vector<16x256xf32>
    %23 = tpu.matmul %22, %20, %cst_13 {dimension_numbers = #tpu.dot_dimension_numbers<[1], [1], [0], [0], [0, 0, 1, 0], [], []>} : vector<16x8xbf16>, vector<256x8xbf16>, vector<16x256xf32> -> vector<16x256xf32>
    %24 = arith.addf %18, %23 : vector<16x256xf32>
    %c1_i32 = arith.constant 1 : i32
    %25 = arith.addi %1, %c1_i32 : i32
    %c0_14 = arith.constant 0 : index
    %c0_15 = arith.constant 0 : index
    %26 = arith.index_cast %25 : i32 to index
    %c0_16 = arith.constant 0 : index
    %c0_17 = arith.constant 0 : index
    %c0_18 = arith.constant 0 : index
    %27 = vector.load %arg2[%c0_14, %c0_15, %26, %c0_16, %c0_17, %c0_18] : memref<1x1x18x1x18x8xbf16, #tpu.memory_space<vmem>>, vector<1x1x16x1x18x8xbf16>
    %28 = vector.shape_cast %27 : vector<1x1x16x1x18x8xbf16> to vector<16x18x8xbf16>
    %29 = vector.extract_strided_slice %28 {offsets = [0, 0, 0], sizes = [16, 16, 8], strides = [1, 1, 1]} : vector<16x18x8xbf16> to vector<16x16x8xbf16>
    %30 = vector.shape_cast %29 : vector<16x16x8xbf16> to vector<256x8xbf16>
    %c3 = arith.constant 3 : index
    %c0_19 = arith.constant 0 : index
    %c0_20 = arith.constant 0 : index
    %31 = vector.load %arg3[%c3, %c0_19, %c0_20] : memref<9x16x8xbf16, #tpu.memory_space<vmem>>, vector<1x16x8xbf16>
    %32 = vector.shape_cast %31 : vector<1x16x8xbf16> to vector<16x8xbf16>
    %cst_21 = arith.constant dense<0.000000e+00> : vector<16x256xf32>
    %33 = tpu.matmul %32, %30, %cst_21 {dimension_numbers = #tpu.dot_dimension_numbers<[1], [1], [0], [0], [0, 0, 1, 0], [], []>} : vector<16x8xbf16>, vector<256x8xbf16>, vector<16x256xf32> -> vector<16x256xf32>
    %34 = arith.addf %24, %33 : vector<16x256xf32>
    %35 = vector.extract_strided_slice %28 {offsets = [0, 1, 0], sizes = [16, 16, 8], strides = [1, 1, 1]} : vector<16x18x8xbf16> to vector<16x16x8xbf16>
    %36 = vector.shape_cast %35 : vector<16x16x8xbf16> to vector<256x8xbf16>
    %c4 = arith.constant 4 : index
    %c0_22 = arith.constant 0 : index
    %c0_23 = arith.constant 0 : index
    %37 = vector.load %arg3[%c4, %c0_22, %c0_23] : memref<9x16x8xbf16, #tpu.memory_space<vmem>>, vector<1x16x8xbf16>
    %38 = vector.shape_cast %37 : vector<1x16x8xbf16> to vector<16x8xbf16>
    %cst_24 = arith.constant dense<0.000000e+00> : vector<16x256xf32>
    %39 = tpu.matmul %38, %36, %cst_24 {dimension_numbers = #tpu.dot_dimension_numbers<[1], [1], [0], [0], [0, 0, 1, 0], [], []>} : vector<16x8xbf16>, vector<256x8xbf16>, vector<16x256xf32> -> vector<16x256xf32>
    %40 = arith.addf %34, %39 : vector<16x256xf32>
    %41 = vector.extract_strided_slice %28 {offsets = [0, 2, 0], sizes = [16, 16, 8], strides = [1, 1, 1]} : vector<16x18x8xbf16> to vector<16x16x8xbf16>
    %42 = vector.shape_cast %41 : vector<16x16x8xbf16> to vector<256x8xbf16>
    %c5 = arith.constant 5 : index
    %c0_25 = arith.constant 0 : index
    %c0_26 = arith.constant 0 : index
    %43 = vector.load %arg3[%c5, %c0_25, %c0_26] : memref<9x16x8xbf16, #tpu.memory_space<vmem>>, vector<1x16x8xbf16>
    %44 = vector.shape_cast %43 : vector<1x16x8xbf16> to vector<16x8xbf16>
    %cst_27 = arith.constant dense<0.000000e+00> : vector<16x256xf32>
    %45 = tpu.matmul %44, %42, %cst_27 {dimension_numbers = #tpu.dot_dimension_numbers<[1], [1], [0], [0], [0, 0, 1, 0], [], []>} : vector<16x8xbf16>, vector<256x8xbf16>, vector<16x256xf32> -> vector<16x256xf32>
    %46 = arith.addf %40, %45 : vector<16x256xf32>
    %c2_i32 = arith.constant 2 : i32
    %47 = arith.addi %1, %c2_i32 : i32
    %c0_28 = arith.constant 0 : index
    %c0_29 = arith.constant 0 : index
    %48 = arith.index_cast %47 : i32 to index
    %c0_30 = arith.constant 0 : index
    %c0_31 = arith.constant 0 : index
    %c0_32 = arith.constant 0 : index
    %49 = vector.load %arg2[%c0_28, %c0_29, %48, %c0_30, %c0_31, %c0_32] : memref<1x1x18x1x18x8xbf16, #tpu.memory_space<vmem>>, vector<1x1x16x1x18x8xbf16>
    %50 = vector.shape_cast %49 : vector<1x1x16x1x18x8xbf16> to vector<16x18x8xbf16>
    %51 = vector.extract_strided_slice %50 {offsets = [0, 0, 0], sizes = [16, 16, 8], strides = [1, 1, 1]} : vector<16x18x8xbf16> to vector<16x16x8xbf16>
    %52 = vector.shape_cast %51 : vector<16x16x8xbf16> to vector<256x8xbf16>
    %c6 = arith.constant 6 : index
    %c0_33 = arith.constant 0 : index
    %c0_34 = arith.constant 0 : index
    %53 = vector.load %arg3[%c6, %c0_33, %c0_34] : memref<9x16x8xbf16, #tpu.memory_space<vmem>>, vector<1x16x8xbf16>
    %54 = vector.shape_cast %53 : vector<1x16x8xbf16> to vector<16x8xbf16>
    %cst_35 = arith.constant dense<0.000000e+00> : vector<16x256xf32>
    %55 = tpu.matmul %54, %52, %cst_35 {dimension_numbers = #tpu.dot_dimension_numbers<[1], [1], [0], [0], [0, 0, 1, 0], [], []>} : vector<16x8xbf16>, vector<256x8xbf16>, vector<16x256xf32> -> vector<16x256xf32>
    %56 = arith.addf %46, %55 : vector<16x256xf32>
    %57 = vector.extract_strided_slice %50 {offsets = [0, 1, 0], sizes = [16, 16, 8], strides = [1, 1, 1]} : vector<16x18x8xbf16> to vector<16x16x8xbf16>
    %58 = vector.shape_cast %57 : vector<16x16x8xbf16> to vector<256x8xbf16>
    %c7 = arith.constant 7 : index
    %c0_36 = arith.constant 0 : index
    %c0_37 = arith.constant 0 : index
    %59 = vector.load %arg3[%c7, %c0_36, %c0_37] : memref<9x16x8xbf16, #tpu.memory_space<vmem>>, vector<1x16x8xbf16>
    %60 = vector.shape_cast %59 : vector<1x16x8xbf16> to vector<16x8xbf16>
    %cst_38 = arith.constant dense<0.000000e+00> : vector<16x256xf32>
    %61 = tpu.matmul %60, %58, %cst_38 {dimension_numbers = #tpu.dot_dimension_numbers<[1], [1], [0], [0], [0, 0, 1, 0], [], []>} : vector<16x8xbf16>, vector<256x8xbf16>, vector<16x256xf32> -> vector<16x256xf32>
    %62 = arith.addf %56, %61 : vector<16x256xf32>
    %63 = vector.extract_strided_slice %50 {offsets = [0, 2, 0], sizes = [16, 16, 8], strides = [1, 1, 1]} : vector<16x18x8xbf16> to vector<16x16x8xbf16>
    %64 = vector.shape_cast %63 : vector<16x16x8xbf16> to vector<256x8xbf16>
    %c8 = arith.constant 8 : index
    %c0_39 = arith.constant 0 : index
    %c0_40 = arith.constant 0 : index
    %65 = vector.load %arg3[%c8, %c0_39, %c0_40] : memref<9x16x8xbf16, #tpu.memory_space<vmem>>, vector<1x16x8xbf16>
    %66 = vector.shape_cast %65 : vector<1x16x8xbf16> to vector<16x8xbf16>
    %cst_41 = arith.constant dense<0.000000e+00> : vector<16x256xf32>
    %67 = tpu.matmul %66, %64, %cst_41 {dimension_numbers = #tpu.dot_dimension_numbers<[1], [1], [0], [0], [0, 0, 1, 0], [], []>} : vector<16x8xbf16>, vector<256x8xbf16>, vector<16x256xf32> -> vector<16x256xf32>
    %68 = arith.addf %62, %67 : vector<16x256xf32>
    %c0_42 = arith.constant 0 : index
    %c0_43 = arith.constant 0 : index
    %69 = vector.load %arg4[%c0_42, %c0_43] : memref<16x1xf32, #tpu.memory_space<vmem>>, vector<16x1xf32>
    %70 = vector.broadcast %69 : vector<16x1xf32> to vector<16x256xf32>
    %71 = arith.addf %68, %70 : vector<16x256xf32>
    %cst_44 = arith.constant 0.000000e+00 : f32
    %72 = vector.broadcast %cst_44 : f32 to vector<16x256xf32>
    %73 = arith.maximumf %71, %72 : vector<16x256xf32>
    %c0_45 = arith.constant 0 : index
    %c0_46 = arith.constant 0 : index
    %c0_47 = arith.constant 0 : index
    %74 = vector.load %arg5[%c0_45, %c0_46, %c0_47] : memref<1x16x256xf32, #tpu.memory_space<vmem>>, vector<1x16x256xf32>
    %75 = vector.shape_cast %74 : vector<1x16x256xf32> to vector<16x256xf32>
    %76 = vector.shape_cast %73 : vector<16x256xf32> to vector<1x16x256xf32>
    tpu.vector_store %arg5[%c0_45, %c0_46, %c0_47], %76 {strides = array<i32>} : memref<1x16x256xf32, #tpu.memory_space<vmem>>, vector<1x16x256xf32>,
    return
  }
  func.func @transform_0(%arg0: i32, %arg1: i32) -> (i32, i32, i32, i32, i32, i32) {
    %c0_i32 = arith.constant 0 : i32
    %c0_i32_0 = arith.constant 0 : i32
    %c0_i32_1 = arith.constant 0 : i32
    %c0_i32_2 = arith.constant 0 : i32
    %c0_i32_3 = arith.constant 0 : i32
    %c0_i32_4 = arith.constant 0 : i32
    return %arg0, %c0_i32, %c0_i32_0, %c0_i32_1, %c0_i32_2, %c0_i32_3 : i32, i32, i32, i32, i32, i32
  }
  func.func @transform_1(%arg0: i32, %arg1: i32) -> (i32, i32, i32) {
    %c0_i32 = arith.constant 0 : i32
    %c0_i32_0 = arith.constant 0 : i32
    %c0_i32_1 = arith.constant 0 : i32
    %c0_i32_2 = arith.constant 0 : i32
    return %c0_i32, %c0_i32_0, %c0_i32_1 : i32, i32, i32
  }
  func.func @transform_2(%arg0: i32, %arg1: i32) -> (i32, i32) {
    %c0_i32 = arith.constant 0 : i32
    %c0_i32_0 = arith.constant 0 : i32
    %c0_i32_1 = arith.constant 0 : i32
    return %c0_i32, %c0_i32_0 : i32, i32
  }
  func.func @transform_3(%arg0: i32, %arg1: i32) -> (i32, i32, i32) {
    %c0_i32 = arith.constant 0 : i32
    %c0_i32_0 = arith.constant 0 : i32
    return %arg0, %c0_i32, %arg1 : i32, i32, i32
  }
}

</mosaic_0001>

<llo_original>
// kernel: tpu_custom_call.1
$region0: #{tpu_custom_call.1}
  #allocation0 [shape = 'u32[]', space=smem, size = 0x4, offset = 0x4, fixed_abs, tag = 'smem constant byte address 0x4 - core index']
  #allocation1 [shape = 'u32[144,128]{1,0:T(1,128)}', space=vmem, size = 0x12000, scoped, tag = 'internal scratch']
  %s0 = inlined_call_operand.vmem [shape: bf16[2,1,18,1,18,8], index: 0, kind: input, shape index: {}]
  %s1 = inlined_call_operand.vmem [shape: bf16[9,16,8], index: 1, kind: input, shape index: {}]
  %s2 = inlined_call_operand.vmem [shape: f32[16,1], index: 2, kind: input, shape index: {}]
  %s3 = inlined_call_operand.hbm [shape: f32[2,16,256], index: 3, kind: output, shape index: {}]
  %s4 = sld [smem:[#allocation0]]
  $region45: #{tpu_custom_call.1} parent=0
    _
  %s6 = ssub.s32 1, %s4
  %s7 = scalar_select 0, %s6, %s4
  $region1: #{tpu_custom_call.1} parent=0
    #allocation2 [shape = 'u8[32768]{0}', space=vmem, size = 0x8000, scoped, tag = 'output window, operand 0']
    #allocation3 [shape = 's32[2]{0}', space=sflag, size = 0x8, scoped, tag = 'scoped memory for tpu_custom_call.1']
    %8 = vsyncpa [#allocation3], 0
    %s9 = scalar_lea.sflag [#allocation3], 1
    %10 = vsyncpa %s9, 0
    loop: start=0, step=1, limit=4
    $region2: #{tpu_custom_call.1} parent=1 // loop_pre_header
      _
    $region3: #{tpu_custom_call.1} parent=1 // loop_header
      %s12 = sphi 0, %s16
      %p13 = scmp.ge.s32.totalorder %s12, 4
      %s19 = sphi 0, %s31
      %s20 = sphi 0, %s27
      %s21 = sphi 0, %s19
      %s22 = sphi 0, %s20
      %s23 = sphi 0, %s21
      %s24 = sphi 0, %s22
      %s34 = sphi 0, %s36
      %s37 = sphi 0, %s34
      %s38 = sphi 0, %s37
      %s54 = sphi 0, %s38
      %s58 = sphi 0, %s58
      %s60 = sphi 0, %s58
      %s61 = sphi 0, %s60
      %s75 = sphi 0, %s61
      %s79 = sphi 0, %s79
      %s81 = sphi 0, %s79
      %s82 = sphi 0, %s81
      %s96 = sphi 0, %s82
      %s104 = sphi 0, %s106
      %s107 = sphi 0, %s104
      %s108 = sphi 0, %s107
      %s124 = sphi 0, %s108
    $region4: #{tpu_custom_call.1} parent=1 // loop_header_branch
      %15 = sbr.rel (%p13) target = $region8
    $region5: #{tpu_custom_call.1} parent=1 // loop_body
      %s17 = ssub.s32 %s12, 1
      %s18 = ssub.s32 %s12, 2
      %s25 = sadd.s32 1, %s20
      %p26 = scmp.ge.s32.totalorder %s25, 1
      %s27 = scalar_select %p26, 0, %s25
      %s28 = sadd.s32 1, %s19
      %s29 = scalar_select %p26, %s28, %s19
      %p30 = scmp.ge.s32.totalorder %s29, 2
      %s31 = scalar_select %p30, 0, %s29
      %s32 = ssub.s32 %s19, %s31
      %p33 = scmp.eq.s32.totalorder %s32, 0
      %s35 = sadd.s32 %s34, 1
      %s36 = scalar_select %p33, %s34, %s35
      %p39 = pneg %p33
      %p40 = scmp.eq.s32.totalorder %s12, 1
      %p41 = por %p39, %p40
      %p42 = scmp.ne.s32.totalorder %s34, %s37
      %p43 = scmp.eq.s32.totalorder %s12, 0
      %p44 = por %p42, %p43
      %p45 = scmp.ne.s32.totalorder %s34, %s37
      %p46 = scmp.eq.s32.totalorder %s17, 1
      %p47 = por %p45, %p46
      %p48 = scmp.ne.s32.totalorder %s37, %s38
      %p49 = scmp.eq.s32.totalorder %s17, 0
      %p50 = por %p48, %p49
      %p51 = scmp.ne.s32.totalorder %s37, %s38
      %p52 = scmp.eq.s32.totalorder %s18, 1
      %p53 = por %p51, %p52
      %p55 = scmp.ne.s32.totalorder %s38, %s54
      %p56 = scmp.eq.s32.totalorder %s18, 0
      %p57 = por %p55, %p56
      %s59 = sadd.s32 %s58, 1
      %p62 = scmp.eq.s32.totalorder %s12, 1
      %p63 = scmp.ne.s32.totalorder %s58, %s60
      %p64 = scmp.eq.s32.totalorder %s12, 0
      %p65 = por %p63, %p64
      %p66 = scmp.ne.s32.totalorder %s58, %s60
      %p67 = scmp.eq.s32.totalorder %s17, 1
      %p68 = por %p66, %p67
      %p69 = scmp.ne.s32.totalorder %s60, %s61
      %p70 = scmp.eq.s32.totalorder %s17, 0
      %p71 = por %p69, %p70
      %p72 = scmp.ne.s32.totalorder %s60, %s61
      %p73 = scmp.eq.s32.totalorder %s18, 1
      %p74 = por %p72, %p73
      %p76 = scmp.ne.s32.totalorder %s61, %s75
      %p77 = scmp.eq.s32.totalorder %s18, 0
      %p78 = por %p76, %p77
      %s80 = sadd.s32 %s79, 1
      %p83 = scmp.eq.s32.totalorder %s12, 1
      %p84 = scmp.ne.s32.totalorder %s79, %s81
      %p85 = scmp.eq.s32.totalorder %s12, 0
      %p86 = por %p84, %p85
      %p87 = scmp.ne.s32.totalorder %s79, %s81
      %p88 = scmp.eq.s32.totalorder %s17, 1
      %p89 = por %p87, %p88
      %p90 = scmp.ne.s32.totalorder %s81, %s82
      %p91 = scmp.eq.s32.totalorder %s17, 0
      %p92 = por %p90, %p91
      %p93 = scmp.ne.s32.totalorder %s81, %s82
      %p94 = scmp.eq.s32.totalorder %s18, 1
      %p95 = por %p93, %p94
      %p97 = scmp.ne.s32.totalorder %s82, %s96
      %p98 = scmp.eq.s32.totalorder %s18, 0
      %p99 = por %p97, %p98
      %s100 = ssub.s32 %s19, %s31
      %s101 = ssub.s32 %s20, %s27
      %s102 = sor.u32 %s100, %s101
      %p103 = scmp.eq.s32.totalorder %s102, 0
      %s105 = sadd.s32 %s104, 1
      %s106 = scalar_select %p103, %s104, %s105
      %p109 = pneg %p103
      %p110 = scmp.eq.s32.totalorder %s12, 1
      %p111 = por %p109, %p110
      %p112 = scmp.ne.s32.totalorder %s104, %s107
      %p113 = scmp.eq.s32.totalorder %s12, 0
      %p114 = por %p112, %p113
      %p115 = scmp.ne.s32.totalorder %s104, %s107
      %p116 = scmp.eq.s32.totalorder %s17, 1
      %p117 = por %p115, %p116
      %p118 = scmp.ne.s32.totalorder %s107, %s108
      %p119 = scmp.eq.s32.totalorder %s17, 0
      %p120 = por %p118, %p119
      %p121 = scmp.ne.s32.totalorder %s107, %s108
      %p122 = scmp.eq.s32.totalorder %s18, 1
      %p123 = por %p121, %p122
      %p125 = scmp.ne.s32.totalorder %s108, %s124
      %p126 = scmp.eq.s32.totalorder %s18, 0
      %p127 = por %p125, %p126
      %p128 = scmp.le.s32.totalorder 1, %s12
      %p129 = scmp.lt.s32.totalorder %s12, 3
      %p130 = pnand %p128, %p129
      %p131 = pneg %p130
      // Predicated region
      $region9: #{tpu_custom_call.1} parent=5 // pred_check
        _
      $region10: #{tpu_custom_call.1} parent=5 // pred_check_branch
        %133 = sbr.rel (%p130) target = $region12
      $region11: #{tpu_custom_call.1} parent=5 // pred_region
        %s134 = ssub.s32 %s12, 1
        // Predicated region
        $region13: #{tpu_custom_call.1} parent=11 // pred_check
          %p135 = pneg %p71
        $region14: #{tpu_custom_call.1} parent=11 // pred_check_branch
          %137 = sbr.rel (%p135) target = $region16
        $region15: #{tpu_custom_call.1} parent=11 // pred_region
          _
        $region16: #{tpu_custom_call.1} parent=11 // pred_fallthru
          _
        // Predicated region
        $region17: #{tpu_custom_call.1} parent=11 // pred_check
          %p138 = pneg %p92
        $region18: #{tpu_custom_call.1} parent=11 // pred_check_branch
          %140 = sbr.rel (%p138) target = $region20
        $region19: #{tpu_custom_call.1} parent=11 // pred_region
          _
        $region20: #{tpu_custom_call.1} parent=11 // pred_fallthru
          _
      $region12: #{tpu_custom_call.1} parent=5 // pred_fallthru
        _
      %p141 = scmp.lt.s32.totalorder %s12, 2
      // Predicated region
      $region21: #{tpu_custom_call.1} parent=5 // pred_check
        %p142 = pneg %p141
      $region22: #{tpu_custom_call.1} parent=5 // pred_check_branch
        %144 = sbr.rel (%p142) target = $region24
      $region23: #{tpu_custom_call.1} parent=5 // pred_region
        // Predicated region
        $region25: #{tpu_custom_call.1} parent=23 // pred_check
          %p145 = pneg %p44
        $region26: #{tpu_custom_call.1} parent=23 // pred_check_branch
          %147 = sbr.rel (%p145) target = $region28
        $region27: #{tpu_custom_call.1} parent=23 // pred_region
          %p148 = scmp.lt.s32.totalorder %s19, 1
          %s149 = scalar_select %p148, %s19, 1
          %s150 = smul.addr %s149, 54
          %s151 = smul.addr %s150, 4
          %s152 = scalar_lea.vmem %s0, %s151
        $region28: #{tpu_custom_call.1} parent=23 // pred_fallthru
          _
      $region24: #{tpu_custom_call.1} parent=5 // pred_fallthru
        _
      %p153 = scmp.le.s32.totalorder 1, %s12
      %p154 = scmp.lt.s32.totalorder %s12, 3
      %p155 = pnand %p153, %p154
      %p156 = pneg %p155
      // Predicated region
      $region29: #{tpu_custom_call.1} parent=5 // pred_check
        _
      $region30: #{tpu_custom_call.1} parent=5 // pred_check_branch
        %158 = sbr.rel (%p155) target = $region32
      $region31: #{tpu_custom_call.1} parent=5 // pred_region
        %s159 = ssub.s32 %s12, 1
        %p160 = scmp.lt.s32.totalorder %s21, 1
        %s161 = scalar_select %p160, %s21, 1
        %s162 = smul.addr %s161, 54
        %s163 = smul.addr %s162, 4
        %s164 = scalar_lea.vmem %s0, %s163
        %p165 = pneg %p50
        %p166 = pneg %p47
        %p167 = pneg %p71
        %p168 = pneg %p68
        %p169 = pneg %p92
        %p170 = pneg %p89
        %p171 = pneg %p120
        %p172 = pneg %p117
        %s173 = sand.u32 %s107, 1
        %s174 = scalar_lea.sflag [#allocation3], %s173
        %s175 = sand.u32 %s107, 1
        %s176 = smul.addr %s175, 32
        %s177 = scalar_lea.vmem [#allocation2], %s176
        %p178 = scmp.lt.s32.totalorder %s21, 1
        %s179 = scalar_select %p178, %s21, 1
        %s180 = smul.addr %s179, 54
        %s181 = smul.addr %s180, 4
        %s182 = scalar_lea.vmem %s0, %s181
        %s183 = smul.u32 2, %s22
        %s185 = smul.u32 %s22, 16
        %s186 = smul.u32 %s185, 3
        %s187 = smul.addr %s186, 4
        %s188 = scalar_lea.vmem %s182, %s187
        %v189 = vld [vmem:[%s188] sm:$0xf]
        %v190 = vld [vmem:[%s188 + $0x4] sm:$0xf]
        %v191 = vld [vmem:[%s188 + $0x8] sm:$0x1]
        %v192 = vld [vmem:[%s188 + $0xc] sm:$0xf]
        %v193 = vld [vmem:[%s188 + $0x10] sm:$0xf]
        %v194 = vld [vmem:[%s188 + $0x14] sm:$0x1]
        %v195 = vld [vmem:[%s188 + $0x18] sm:$0xf]
        %v196 = vld [vmem:[%s188 + $0x1c] sm:$0xf]
        %v197 = vld [vmem:[%s188 + $0x20] sm:$0x1]
        %v198 = vld [vmem:[%s188 + $0x24] sm:$0xf]
        %v199 = vld [vmem:[%s188 + $0x28] sm:$0xf]
        %v200 = vld [vmem:[%s188 + $0x2c] sm:$0x1]
        %v201 = vld [vmem:[%s188 + $0x30] sm:$0xf]
        %v202 = vld [vmem:[%s188 + $0x34] sm:$0xf]
        %v203 = vld [vmem:[%s188 + $0x38] sm:$0x1]
        %v204 = vld [vmem:[%s188 + $0x3c] sm:$0xf]
        %v205 = vld [vmem:[%s188 + $0x40] sm:$0xf]
        %v206 = vld [vmem:[%s188 + $0x44] sm:$0x1]
        %v207 = vld [vmem:[%s188 + $0x48] sm:$0xf]
        %v208 = vld [vmem:[%s188 + $0x4c] sm:$0xf]
        %v209 = vld [vmem:[%s188 + $0x50] sm:$0x1]
        %v210 = vld [vmem:[%s188 + $0x54] sm:$0xf]
        %v211 = vld [vmem:[%s188 + $0x58] sm:$0xf]
        %v212 = vld [vmem:[%s188 + $0x5c] sm:$0x1]
        %v213 = vld [vmem:[%s188 + $0x60] sm:$0xf]
        %v214 = vld [vmem:[%s188 + $0x64] sm:$0xf]
        %v215 = vld [vmem:[%s188 + $0x68] sm:$0x1]
        %v216 = vld [vmem:[%s188 + $0x6c] sm:$0xf]
        %v217 = vld [vmem:[%s188 + $0x70] sm:$0xf]
        %v218 = vld [vmem:[%s188 + $0x74] sm:$0x1]
        %v219 = vld [vmem:[%s188 + $0x78] sm:$0xf]
        %v220 = vld [vmem:[%s188 + $0x7c] sm:$0xf]
        %v221 = vld [vmem:[%s188 + $0x80] sm:$0x1]
        %v222 = vld [vmem:[%s188 + $0x84] sm:$0xf]
        %v223 = vld [vmem:[%s188 + $0x88] sm:$0xf]
        %v224 = vld [vmem:[%s188 + $0x8c] sm:$0x1]
        %v225 = vld [vmem:[%s188 + $0x90] sm:$0xf]
        %v226 = vld [vmem:[%s188 + $0x94] sm:$0xf]
        %v227 = vld [vmem:[%s188 + $0x98] sm:$0x1]
        %v228 = vld [vmem:[%s188 + $0x9c] sm:$0xf]
        %v229 = vld [vmem:[%s188 + $0xa0] sm:$0xf]
        %v230 = vld [vmem:[%s188 + $0xa4] sm:$0x1]
        %v231 = vld [vmem:[%s188 + $0xa8] sm:$0xf]
        %v232 = vld [vmem:[%s188 + $0xac] sm:$0xf]
        %v233 = vld [vmem:[%s188 + $0xb0] sm:$0x1]
        %v234 = vld [vmem:[%s188 + $0xb4] sm:$0xf]
        %v235 = vld [vmem:[%s188 + $0xb8] sm:$0xf]
        %v236 = vld [vmem:[%s188 + $0xbc] sm:$0x1]
        %v237 = vld [vmem:[%s1] sm:$0xf]
        %v238 = vld [vmem:[%s1 + $0x4] sm:$0xf]
        %vm239 = vsmask.f32 3328
        %vm240 = vsmask.f32 7440
        %vm241 = vmor %vm239, %vm240
        %v243 = vshrl.u32 %v189, 16
        %v245 = vrot.slane %v243, 4
        %v246 = vshll.u32 %v189, 16
        %v248 = vrot.slane %v246, 5
        %v249 = vor.u32 %v245, %v248
        %v250 = vrot.slane %v249, 4
        %v252 = vshll.u32 %v190, 16
        %v254 = vrot.slane %v252, 5
        %v255 = vsel %vm241, %v250, %v254
        %v256 = vshrl.u32 %v190, 16
        %v258 = vrot.slane %v256, 4
        %v259 = vor.u32 %v258, %v254
        %v260 = vrot.slane %v259, 4
        %v262 = vshll.u32 %v191, 16
        %v264 = vrot.slane %v262, 5
        %v265 = vsel %vm241, %v260, %v264
        %v267 = vshrl.u32 %v192, 16
        %v269 = vrot.slane %v267, 4
        %v270 = vshll.u32 %v192, 16
        %v272 = vrot.slane %v270, 5
        %v273 = vor.u32 %v269, %v272
        %v274 = vrot.slane %v273, 4
        %v276 = vshll.u32 %v193, 16
        %v278 = vrot.slane %v276, 5
        %v279 = vsel %vm241, %v274, %v278
        %v280 = vshrl.u32 %v193, 16
        %v282 = vrot.slane %v280, 4
        %v283 = vor.u32 %v282, %v278
        %v284 = vrot.slane %v283, 4
        %v286 = vshll.u32 %v194, 16
        %v288 = vrot.slane %v286, 5
        %v289 = vsel %vm241, %v284, %v288
        %v291 = vshrl.u32 %v195, 16
        %v293 = vrot.slane %v291, 4
        %v294 = vshll.u32 %v195, 16
        %v296 = vrot.slane %v294, 5
        %v297 = vor.u32 %v293, %v296
        %v298 = vrot.slane %v297, 4
        %v300 = vshll.u32 %v196, 16
        %v302 = vrot.slane %v300, 5
        %v303 = vsel %vm241, %v298, %v302
        %v304 = vshrl.u32 %v196, 16
        %v306 = vrot.slane %v304, 4
        %v307 = vor.u32 %v306, %v302
        %v308 = vrot.slane %v307, 4
        %v310 = vshll.u32 %v197, 16
        %v312 = vrot.slane %v310, 5
        %v313 = vsel %vm241, %v308, %v312
        %v315 = vshrl.u32 %v198, 16
        %v317 = vrot.slane %v315, 4
        %v318 = vshll.u32 %v198, 16
        %v320 = vrot.slane %v318, 5
        %v321 = vor.u32 %v317, %v320
        %v322 = vrot.slane %v321, 4
        %v324 = vshll.u32 %v199, 16
        %v326 = vrot.slane %v324, 5
        %v327 = vsel %vm241, %v322, %v326
        %v328 = vshrl.u32 %v199, 16
        %v330 = vrot.slane %v328, 4
        %v331 = vor.u32 %v330, %v326
        %v332 = vrot.slane %v331, 4
        %v334 = vshll.u32 %v200, 16
        %v336 = vrot.slane %v334, 5
        %v337 = vsel %vm241, %v332, %v336
        %v339 = vshrl.u32 %v201, 16
        %v341 = vrot.slane %v339, 4
        %v342 = vshll.u32 %v201, 16
        %v344 = vrot.slane %v342, 5
        %v345 = vor.u32 %v341, %v344
        %v346 = vrot.slane %v345, 4
        %v348 = vshll.u32 %v202, 16
        %v350 = vrot.slane %v348, 5
        %v351 = vsel %vm241, %v346, %v350
        %v352 = vshrl.u32 %v202, 16
        %v354 = vrot.slane %v352, 4
        %v355 = vor.u32 %v354, %v350
        %v356 = vrot.slane %v355, 4
        %v358 = vshll.u32 %v203, 16
        %v360 = vrot.slane %v358, 5
        %v361 = vsel %vm241, %v356, %v360
        %v363 = vshrl.u32 %v204, 16
        %v365 = vrot.slane %v363, 4
        %v366 = vshll.u32 %v204, 16
        %v368 = vrot.slane %v366, 5
        %v369 = vor.u32 %v365, %v368
        %v370 = vrot.slane %v369, 4
        %v372 = vshll.u32 %v205, 16
        %v374 = vrot.slane %v372, 5
        %v375 = vsel %vm241, %v370, %v374
        %v376 = vshrl.u32 %v205, 16
        %v378 = vrot.slane %v376, 4
        %v379 = vor.u32 %v378, %v374
        %v380 = vrot.slane %v379, 4
        %v382 = vshll.u32 %v206, 16
        %v384 = vrot.slane %v382, 5
        %v385 = vsel %vm241, %v380, %v384
        %v387 = vshrl.u32 %v207, 16
        %v389 = vrot.slane %v387, 4
        %v390 = vshll.u32 %v207, 16
        %v392 = vrot.slane %v390, 5
        %v393 = vor.u32 %v389, %v392
        %v394 = vrot.slane %v393, 4
        %v396 = vshll.u32 %v208, 16
        %v398 = vrot.slane %v396, 5
        %v399 = vsel %vm241, %v394, %v398
        %v400 = vshrl.u32 %v208, 16
        %v402 = vrot.slane %v400, 4
        %v403 = vor.u32 %v402, %v398
        %v404 = vrot.slane %v403, 4
        %v406 = vshll.u32 %v209, 16
        %v408 = vrot.slane %v406, 5
        %v409 = vsel %vm241, %v404, %v408
        %v411 = vshrl.u32 %v210, 16
        %v413 = vrot.slane %v411, 4
        %v414 = vshll.u32 %v210, 16
        %v416 = vrot.slane %v414, 5
        %v417 = vor.u32 %v413, %v416
        %v418 = vrot.slane %v417, 4
        %v420 = vshll.u32 %v211, 16
        %v422 = vrot.slane %v420, 5
        %v423 = vsel %vm241, %v418, %v422
        %v424 = vshrl.u32 %v211, 16
        %v426 = vrot.slane %v424, 4
        %v427 = vor.u32 %v426, %v422
        %v428 = vrot.slane %v427, 4
        %v430 = vshll.u32 %v212, 16
        %v432 = vrot.slane %v430, 5
        %v433 = vsel %vm241, %v428, %v432
        %v435 = vshrl.u32 %v213, 16
        %v437 = vrot.slane %v435, 4
        %v438 = vshll.u32 %v213, 16
        %v440 = vrot.slane %v438, 5
        %v441 = vor.u32 %v437, %v440
        %v442 = vrot.slane %v441, 4
        %v444 = vshll.u32 %v214, 16
        %v446 = vrot.slane %v444, 5
        %v447 = vsel %vm241, %v442, %v446
        %v448 = vshrl.u32 %v214, 16
        %v450 = vrot.slane %v448, 4
        %v451 = vor.u32 %v450, %v446
        %v452 = vrot.slane %v451, 4
        %v454 = vshll.u32 %v215, 16
        %v456 = vrot.slane %v454, 5
        %v457 = vsel %vm241, %v452, %v456
        %v459 = vshrl.u32 %v216, 16
        %v461 = vrot.slane %v459, 4
        %v462 = vshll.u32 %v216, 16
        %v464 = vrot.slane %v462, 5
        %v465 = vor.u32 %v461, %v464
        %v466 = vrot.slane %v465, 4
        %v468 = vshll.u32 %v217, 16
        %v470 = vrot.slane %v468, 5
        %v471 = vsel %vm241, %v466, %v470
        %v472 = vshrl.u32 %v217, 16
        %v474 = vrot.slane %v472, 4
        %v475 = vor.u32 %v474, %v470
        %v476 = vrot.slane %v475, 4
        %v478 = vshll.u32 %v218, 16
        %v480 = vrot.slane %v478, 5
        %v481 = vsel %vm241, %v476, %v480
        %v483 = vshrl.u32 %v219, 16
        %v485 = vrot.slane %v483, 4
        %v486 = vshll.u32 %v219, 16
        %v488 = vrot.slane %v486, 5
        %v489 = vor.u32 %v485, %v488
        %v490 = vrot.slane %v489, 4
        %v492 = vshll.u32 %v220, 16
        %v494 = vrot.slane %v492, 5
        %v495 = vsel %vm241, %v490, %v494
        %v496 = vshrl.u32 %v220, 16
        %v498 = vrot.slane %v496, 4
        %v499 = vor.u32 %v498, %v494
        %v500 = vrot.slane %v499, 4
        %v502 = vshll.u32 %v221, 16
        %v504 = vrot.slane %v502, 5
        %v505 = vsel %vm241, %v500, %v504
        %v507 = vshrl.u32 %v222, 16
        %v509 = vrot.slane %v507, 4
        %v510 = vshll.u32 %v222, 16
        %v512 = vrot.slane %v510, 5
        %v513 = vor.u32 %v509, %v512
        %v514 = vrot.slane %v513, 4
        %v516 = vshll.u32 %v223, 16
        %v518 = vrot.slane %v516, 5
        %v519 = vsel %vm241, %v514, %v518
        %v520 = vshrl.u32 %v223, 16
        %v522 = vrot.slane %v520, 4
        %v523 = vor.u32 %v522, %v518
        %v524 = vrot.slane %v523, 4
        %v526 = vshll.u32 %v224, 16
        %v528 = vrot.slane %v526, 5
        %v529 = vsel %vm241, %v524, %v528
        %v531 = vshrl.u32 %v225, 16
        %v533 = vrot.slane %v531, 4
        %v534 = vshll.u32 %v225, 16
        %v536 = vrot.slane %v534, 5
        %v537 = vor.u32 %v533, %v536
        %v538 = vrot.slane %v537, 4
        %v540 = vshll.u32 %v226, 16
        %v542 = vrot.slane %v540, 5
        %v543 = vsel %vm241, %v538, %v542
        %v544 = vshrl.u32 %v226, 16
        %v546 = vrot.slane %v544, 4
        %v547 = vor.u32 %v546, %v542
        %v548 = vrot.slane %v547, 4
        %v550 = vshll.u32 %v227, 16
        %v552 = vrot.slane %v550, 5
        %v553 = vsel %vm241, %v548, %v552
        %v555 = vshrl.u32 %v228, 16
        %v557 = vrot.slane %v555, 4
        %v558 = vshll.u32 %v228, 16
        %v560 = vrot.slane %v558, 5
        %v561 = vor.u32 %v557, %v560
        %v562 = vrot.slane %v561, 4
        %v564 = vshll.u32 %v229, 16
        %v566 = vrot.slane %v564, 5
        %v567 = vsel %vm241, %v562, %v566
        %v568 = vshrl.u32 %v229, 16
        %v570 = vrot.slane %v568, 4
        %v571 = vor.u32 %v570, %v566
        %v572 = vrot.slane %v571, 4
        %v574 = vshll.u32 %v230, 16
        %v576 = vrot.slane %v574, 5
        %v577 = vsel %vm241, %v572, %v576
        %v579 = vshrl.u32 %v231, 16
        %v581 = vrot.slane %v579, 4
        %v582 = vshll.u32 %v231, 16
        %v584 = vrot.slane %v582, 5
        %v585 = vor.u32 %v581, %v584
        %v586 = vrot.slane %v585, 4
        %v588 = vshll.u32 %v232, 16
        %v590 = vrot.slane %v588, 5
        %v591 = vsel %vm241, %v586, %v590
        %v592 = vshrl.u32 %v232, 16
        %v594 = vrot.slane %v592, 4
        %v595 = vor.u32 %v594, %v590
        %v596 = vrot.slane %v595, 4
        %v598 = vshll.u32 %v233, 16
        %v600 = vrot.slane %v598, 5
        %v601 = vsel %vm241, %v596, %v600
        %v603 = vshrl.u32 %v234, 16
        %v605 = vrot.slane %v603, 4
        %v606 = vshll.u32 %v234, 16
        %v608 = vrot.slane %v606, 5
        %v609 = vor.u32 %v605, %v608
        %v610 = vrot.slane %v609, 4
        %v612 = vshll.u32 %v235, 16
        %v614 = vrot.slane %v612, 5
        %v615 = vsel %vm241, %v610, %v614
        %v616 = vshrl.u32 %v235, 16
        %v618 = vrot.slane %v616, 4
        %v619 = vor.u32 %v618, %v614
        %v620 = vrot.slane %v619, 4
        %v622 = vshll.u32 %v236, 16
        %v624 = vrot.slane %v622, 5
        %v625 = vsel %vm241, %v620, %v624
        %s626 = scalar_lea.vmem %s1, 8
        %v627 = vld [vmem:[%s626] sm:$0xf]
        %v628 = vld [vmem:[%s626 + $0x4] sm:$0xf]
        %v631 = vunpack.c.l.b16 %v627
        %v632 = vunpack.c.l.b16 %v628
        %v633 = vpack.c.b16 %v632, %v631
        %v634 = vunpack.c.l.b16 %v255
        %v635 = vunpack.c.l.b16 %v265
        %v636 = vunpack.c.l.b16 %v279
        %v637 = vunpack.c.l.b16 %v289
        %v638 = vunpack.c.l.b16 %v303
        %v639 = vunpack.c.l.b16 %v313
        %v640 = vunpack.c.l.b16 %v327
        %v641 = vunpack.c.l.b16 %v337
        %v642 = vunpack.c.l.b16 %v351
        %v643 = vunpack.c.l.b16 %v361
        %v644 = vunpack.c.l.b16 %v375
        %v645 = vunpack.c.l.b16 %v385
        %v646 = vunpack.c.l.b16 %v399
        %v647 = vunpack.c.l.b16 %v409
        %v648 = vunpack.c.l.b16 %v423
        %v649 = vunpack.c.l.b16 %v433
        %v650 = vunpack.c.l.b16 %v447
        %v651 = vunpack.c.l.b16 %v457
        %v652 = vunpack.c.l.b16 %v471
        %v653 = vunpack.c.l.b16 %v481
        %v654 = vunpack.c.l.b16 %v495
        %v655 = vunpack.c.l.b16 %v505
        %v656 = vunpack.c.l.b16 %v519
        %v657 = vunpack.c.l.b16 %v529
        %v658 = vunpack.c.l.b16 %v543
        %v659 = vunpack.c.l.b16 %v553
        %v660 = vunpack.c.l.b16 %v567
        %v661 = vunpack.c.l.b16 %v577
        %v662 = vunpack.c.l.b16 %v591
        %v663 = vunpack.c.l.b16 %v601
        %v664 = vunpack.c.l.b16 %v615
        %v665 = vunpack.c.l.b16 %v625
        %v666 = vpack.c.b16 %v635, %v634
        %v667 = vpack.c.b16 %v637, %v636
        %v668 = vpack.c.b16 %v639, %v638
        %v669 = vpack.c.b16 %v641, %v640
        %v670 = vpack.c.b16 %v643, %v642
        %v671 = vpack.c.b16 %v645, %v644
        %v672 = vpack.c.b16 %v647, %v646
        %v673 = vpack.c.b16 %v649, %v648
        %v674 = vpack.c.b16 %v651, %v650
        %v675 = vpack.c.b16 %v653, %v652
        %v676 = vpack.c.b16 %v655, %v654
        %v677 = vpack.c.b16 %v657, %v656
        %v678 = vpack.c.b16 %v659, %v658
        %v679 = vpack.c.b16 %v661, %v660
        %v680 = vpack.c.b16 %v663, %v662
        %v681 = vpack.c.b16 %v665, %v664
        %vm682 = vcmask 64512
        %v684 = vsel %vm682, %v633, 0
        %v687 = vsel %vm682, %v666, 0
        %v690 = vsel %vm682, %v667, 0
        %v693 = vsel %vm682, %v668, 0
        %v696 = vsel %vm682, %v669, 0
        %v699 = vsel %vm682, %v670, 0
        %v702 = vsel %vm682, %v671, 0
        %v705 = vsel %vm682, %v672, 0
        %v708 = vsel %vm682, %v673, 0
        %v711 = vsel %vm682, %v674, 0
        %v714 = vsel %vm682, %v675, 0
        %v717 = vsel %vm682, %v676, 0
        %v720 = vsel %vm682, %v677, 0
        %v723 = vsel %vm682, %v678, 0
        %v726 = vsel %vm682, %v679, 0
        %v729 = vsel %vm682, %v680, 0
        %v732 = vsel %vm682, %v681, 0
        %734 = vmatprep.subr.bf16.mxu0 0
        %735 = vmatpush1.bf16.xpose.msra.mxu0 %v708
        %736 = vmatprep.subr.bf16.mxu0 0
        %737 = vmatpush1.bf16.xpose.msra.mxu0 %v705
        %738 = vmatprep.subr.bf16.mxu0 0
        %739 = vmatpush1.bf16.xpose.msra.mxu0 %v702
        %740 = vmatprep.subr.bf16.mxu0 0
        %741 = vmatpush1.bf16.xpose.msra.mxu0 %v699
        %742 = vmatprep.subr.bf16.mxu0 0
        %743 = vmatpush1.bf16.xpose.msra.mxu0 %v696
        %744 = vmatprep.subr.bf16.mxu0 0
        %745 = vmatpush1.bf16.xpose.msra.mxu0 %v693
        %746 = vmatprep.subr.bf16.mxu0 0
        %747 = vmatpush1.bf16.xpose.msra.mxu0 %v690
        %748 = vmatprep.subr.bf16.mxu0 0
        %749 = vmatpush1.bf16.xpose.msra.mxu0 %v687
        %750 = vmatprep.subr.bf16.mxu0 0
        %751 = vmatpush2.bf16.xpose.msra.mxu0 %v732
        %752 = vmatprep.subr.bf16.mxu0 0
        %753 = vmatpush2.bf16.xpose.msra.mxu0 %v729
        %754 = vmatprep.subr.bf16.mxu0 0
        %755 = vmatpush2.bf16.xpose.msra.mxu0 %v726
        %756 = vmatprep.subr.bf16.mxu0 0
        %757 = vmatpush2.bf16.xpose.msra.mxu0 %v723
        %758 = vmatprep.subr.bf16.mxu0 0
        %759 = vmatpush2.bf16.xpose.msra.mxu0 %v720
        %760 = vmatprep.subr.bf16.mxu0 0
        %761 = vmatpush2.bf16.xpose.msra.mxu0 %v717
        %762 = vmatprep.subr.bf16.mxu0 0
        %763 = vmatpush2.bf16.xpose.msra.mxu0 %v714
        %764 = vmatprep.subr.bf16.mxu0 0
        %765 = vmatpush2.bf16.xpose.msra.mxu0 %v711
        %766 = vmatprep.mubr.bf16.mxu0 0
        %767 = vmatmul.mubr.bf16.gmra.mxu0 %v684
        %v768 = vpop.f32.mrf.mxu0
        %v769 = vadd.f32 0.0, %v768
        %v770 = vpop.f32.mrf.mxu0
        %v771 = vadd.f32 0.0, %v770
        %v772 = vpop.f32.mrf.mxu0
        %v773 = vadd.f32 0.0, %v772
        %v774 = vpop.f32.mrf.mxu0
        %v775 = vadd.f32 0.0, %v774
        %776 = vdwg.mxu0
        %v779 = vunpack.c.l.b16 %v237
        %v780 = vunpack.c.l.b16 %v238
        %v781 = vpack.c.b16 %v780, %v779
        %v814 = vunpack.c.l.b16 %v189
        %v815 = vunpack.c.l.b16 %v190
        %v816 = vunpack.c.l.b16 %v192
        %v817 = vunpack.c.l.b16 %v193
        %v818 = vunpack.c.l.b16 %v195
        %v819 = vunpack.c.l.b16 %v196
        %v820 = vunpack.c.l.b16 %v198
        %v821 = vunpack.c.l.b16 %v199
        %v822 = vunpack.c.l.b16 %v201
        %v823 = vunpack.c.l.b16 %v202
        %v824 = vunpack.c.l.b16 %v204
        %v825 = vunpack.c.l.b16 %v205
        %v826 = vunpack.c.l.b16 %v207
        %v827 = vunpack.c.l.b16 %v208
        %v828 = vunpack.c.l.b16 %v210
        %v829 = vunpack.c.l.b16 %v211
        %v830 = vunpack.c.l.b16 %v213
        %v831 = vunpack.c.l.b16 %v214
        %v832 = vunpack.c.l.b16 %v216
        %v833 = vunpack.c.l.b16 %v217
        %v834 = vunpack.c.l.b16 %v219
        %v835 = vunpack.c.l.b16 %v220
        %v836 = vunpack.c.l.b16 %v222
        %v837 = vunpack.c.l.b16 %v223
        %v838 = vunpack.c.l.b16 %v225
        %v839 = vunpack.c.l.b16 %v226
        %v840 = vunpack.c.l.b16 %v228
        %v841 = vunpack.c.l.b16 %v229
        %v842 = vunpack.c.l.b16 %v231
        %v843 = vunpack.c.l.b16 %v232
        %v844 = vunpack.c.l.b16 %v234
        %v845 = vunpack.c.l.b16 %v235
        %v846 = vpack.c.b16 %v815, %v814
        %v847 = vpack.c.b16 %v817, %v816
        %v848 = vpack.c.b16 %v819, %v818
        %v849 = vpack.c.b16 %v821, %v820
        %v850 = vpack.c.b16 %v823, %v822
        %v851 = vpack.c.b16 %v825, %v824
        %v852 = vpack.c.b16 %v827, %v826
        %v853 = vpack.c.b16 %v829, %v828
        %v854 = vpack.c.b16 %v831, %v830
        %v855 = vpack.c.b16 %v833, %v832
        %v856 = vpack.c.b16 %v835, %v834
        %v857 = vpack.c.b16 %v837, %v836
        %v858 = vpack.c.b16 %v839, %v838
        %v859 = vpack.c.b16 %v841, %v840
        %v860 = vpack.c.b16 %v843, %v842
        %v861 = vpack.c.b16 %v845, %v844
        %v863 = vsel %vm682, %v781, 0
        %v866 = vsel %vm682, %v846, 0
        %v869 = vsel %vm682, %v847, 0
        %v872 = vsel %vm682, %v848, 0
        %v875 = vsel %vm682, %v849, 0
        %v878 = vsel %vm682, %v850, 0
        %v881 = vsel %vm682, %v851, 0
        %v884 = vsel %vm682, %v852, 0
        %v887 = vsel %vm682, %v853, 0
        %v890 = vsel %vm682, %v854, 0
        %v893 = vsel %vm682, %v855, 0
        %v896 = vsel %vm682, %v856, 0
        %v899 = vsel %vm682, %v857, 0
        %v902 = vsel %vm682, %v858, 0
        %v905 = vsel %vm682, %v859, 0
        %v908 = vsel %vm682, %v860, 0
        %v911 = vsel %vm682, %v861, 0
        %913 = vmatprep.subr.bf16.mxu0 0
        %914 = vmatpush1.bf16.xpose.msra.mxu0 %v887
        %915 = vmatprep.subr.bf16.mxu0 0
        %916 = vmatpush1.bf16.xpose.msra.mxu0 %v884
        %917 = vmatprep.subr.bf16.mxu0 0
        %918 = vmatpush1.bf16.xpose.msra.mxu0 %v881
        %919 = vmatprep.subr.bf16.mxu0 0
        %920 = vmatpush1.bf16.xpose.msra.mxu0 %v878
        %921 = vmatprep.subr.bf16.mxu0 0
        %922 = vmatpush1.bf16.xpose.msra.mxu0 %v875
        %923 = vmatprep.subr.bf16.mxu0 0
        %924 = vmatpush1.bf16.xpose.msra.mxu0 %v872
        %925 = vmatprep.subr.bf16.mxu0 0
        %926 = vmatpush1.bf16.xpose.msra.mxu0 %v869
        %927 = vmatprep.subr.bf16.mxu0 0
        %928 = vmatpush1.bf16.xpose.msra.mxu0 %v866
        %929 = vmatprep.subr.bf16.mxu0 0
        %930 = vmatpush2.bf16.xpose.msra.mxu0 %v911
        %931 = vmatprep.subr.bf16.mxu0 0
        %932 = vmatpush2.bf16.xpose.msra.mxu0 %v908
        %933 = vmatprep.subr.bf16.mxu0 0
        %934 = vmatpush2.bf16.xpose.msra.mxu0 %v905
        %935 = vmatprep.subr.bf16.mxu0 0
        %936 = vmatpush2.bf16.xpose.msra.mxu0 %v902
        %937 = vmatprep.subr.bf16.mxu0 0
        %938 = vmatpush2.bf16.xpose.msra.mxu0 %v899
        %939 = vmatprep.subr.bf16.mxu0 0
        %940 = vmatpush2.bf16.xpose.msra.mxu0 %v896
        %941 = vmatprep.subr.bf16.mxu0 0
        %942 = vmatpush2.bf16.xpose.msra.mxu0 %v893
        %943 = vmatprep.subr.bf16.mxu0 0
        %944 = vmatpush2.bf16.xpose.msra.mxu0 %v890
        %945 = vmatprep.mubr.bf16.mxu0 0
        %946 = vmatmul.mubr.bf16.gmra.mxu0 %v863
        %v947 = vpop.f32.mrf.mxu0
        %v948 = vadd.f32 %v769, %v947
        %v949 = vpop.f32.mrf.mxu0
        %v950 = vadd.f32 %v771, %v949
        %v951 = vpop.f32.mrf.mxu0
        %v952 = vadd.f32 %v773, %v951
        %v953 = vpop.f32.mrf.mxu0
        %v954 = vadd.f32 %v775, %v953
        %955 = vdwg.mxu0
        %vm972 = vcmask 1042432
        %vm973 = vcmask 1046532
        %vm974 = vmor %vm972, %vm973
        %v975 = vrot.slane %v189, 5
        %v976 = vrot.slane %v975, 4
        %v977 = vrot.slane %v190, 5
        %v978 = vsel %vm974, %v976, %v977
        %v979 = vrot.slane %v977, 4
        %v980 = vrot.slane %v191, 5
        %v981 = vsel %vm974, %v979, %v980
        %v982 = vrot.slane %v192, 5
        %v983 = vrot.slane %v982, 4
        %v984 = vrot.slane %v193, 5
        %v985 = vsel %vm974, %v983, %v984
        %v986 = vrot.slane %v984, 4
        %v987 = vrot.slane %v194, 5
        %v988 = vsel %vm974, %v986, %v987
        %v989 = vrot.slane %v195, 5
        %v990 = vrot.slane %v989, 4
        %v991 = vrot.slane %v196, 5
        %v992 = vsel %vm974, %v990, %v991
        %v993 = vrot.slane %v991, 4
        %v994 = vrot.slane %v197, 5
        %v995 = vsel %vm974, %v993, %v994
        %v996 = vrot.slane %v198, 5
        %v997 = vrot.slane %v996, 4
        %v998 = vrot.slane %v199, 5
        %v999 = vsel %vm974, %v997, %v998
        %v1000 = vrot.slane %v998, 4
        %v1001 = vrot.slane %v200, 5
        %v1002 = vsel %vm974, %v1000, %v1001
        %v1003 = vrot.slane %v201, 5
        %v1004 = vrot.slane %v1003, 4
        %v1005 = vrot.slane %v202, 5
        %v1006 = vsel %vm974, %v1004, %v1005
        %v1007 = vrot.slane %v1005, 4
        %v1008 = vrot.slane %v203, 5
        %v1009 = vsel %vm974, %v1007, %v1008
        %v1010 = vrot.slane %v204, 5
        %v1011 = vrot.slane %v1010, 4
        %v1012 = vrot.slane %v205, 5
        %v1013 = vsel %vm974, %v1011, %v1012
        %v1014 = vrot.slane %v1012, 4
        %v1015 = vrot.slane %v206, 5
        %v1016 = vsel %vm974, %v1014, %v1015
        %v1017 = vrot.slane %v207, 5
        %v1018 = vrot.slane %v1017, 4
        %v1019 = vrot.slane %v208, 5
        %v1020 = vsel %vm974, %v1018, %v1019
        %v1021 = vrot.slane %v1019, 4
        %v1022 = vrot.slane %v209, 5
        %v1023 = vsel %vm974, %v1021, %v1022
        %v1024 = vrot.slane %v210, 5
        %v1025 = vrot.slane %v1024, 4
        %v1026 = vrot.slane %v211, 5
        %v1027 = vsel %vm974, %v1025, %v1026
        %v1028 = vrot.slane %v1026, 4
        %v1029 = vrot.slane %v212, 5
        %v1030 = vsel %vm974, %v1028, %v1029
        %v1031 = vrot.slane %v213, 5
        %v1032 = vrot.slane %v1031, 4
        %v1033 = vrot.slane %v214, 5
        %v1034 = vsel %vm974, %v1032, %v1033
        %v1035 = vrot.slane %v1033, 4
        %v1036 = vrot.slane %v215, 5
        %v1037 = vsel %vm974, %v1035, %v1036
        %v1038 = vrot.slane %v216, 5
        %v1039 = vrot.slane %v1038, 4
        %v1040 = vrot.slane %v217, 5
        %v1041 = vsel %vm974, %v1039, %v1040
        %v1042 = vrot.slane %v1040, 4
        %v1043 = vrot.slane %v218, 5
        %v1044 = vsel %vm974, %v1042, %v1043
        %v1045 = vrot.slane %v219, 5
        %v1046 = vrot.slane %v1045, 4
        %v1047 = vrot.slane %v220, 5
        %v1048 = vsel %vm974, %v1046, %v1047
        %v1049 = vrot.slane %v1047, 4
        %v1050 = vrot.slane %v221, 5
        %v1051 = vsel %vm974, %v1049, %v1050
        %v1052 = vrot.slane %v222, 5
        %v1053 = vrot.slane %v1052, 4
        %v1054 = vrot.slane %v223, 5
        %v1055 = vsel %vm974, %v1053, %v1054
        %v1056 = vrot.slane %v1054, 4
        %v1057 = vrot.slane %v224, 5
        %v1058 = vsel %vm974, %v1056, %v1057
        %v1059 = vrot.slane %v225, 5
        %v1060 = vrot.slane %v1059, 4
        %v1061 = vrot.slane %v226, 5
        %v1062 = vsel %vm974, %v1060, %v1061
        %v1063 = vrot.slane %v1061, 4
        %v1064 = vrot.slane %v227, 5
        %v1065 = vsel %vm974, %v1063, %v1064
        %v1066 = vrot.slane %v228, 5
        %v1067 = vrot.slane %v1066, 4
        %v1068 = vrot.slane %v229, 5
        %v1069 = vsel %vm974, %v1067, %v1068
        %v1070 = vrot.slane %v1068, 4
        %v1071 = vrot.slane %v230, 5
        %v1072 = vsel %vm974, %v1070, %v1071
        %v1073 = vrot.slane %v231, 5
        %v1074 = vrot.slane %v1073, 4
        %v1075 = vrot.slane %v232, 5
        %v1076 = vsel %vm974, %v1074, %v1075
        %v1077 = vrot.slane %v1075, 4
        %v1078 = vrot.slane %v233, 5
        %v1079 = vsel %vm974, %v1077, %v1078
        %v1080 = vrot.slane %v234, 5
        %v1081 = vrot.slane %v1080, 4
        %v1082 = vrot.slane %v235, 5
        %v1083 = vsel %vm974, %v1081, %v1082
        %v1084 = vrot.slane %v1082, 4
        %v1085 = vrot.slane %v236, 5
        %v1086 = vsel %vm974, %v1084, %v1085
        %s1087 = scalar_lea.vmem %s1, 16
        %v1088 = vld [vmem:[%s1087] sm:$0xf]
        %v1089 = vld [vmem:[%s1087 + $0x4] sm:$0xf]
        %v1092 = vunpack.c.l.b16 %v1088
        %v1093 = vunpack.c.l.b16 %v1089
        %v1094 = vpack.c.b16 %v1093, %v1092
        %v1095 = vunpack.c.l.b16 %v978
        %v1096 = vunpack.c.l.b16 %v981
        %v1097 = vunpack.c.l.b16 %v985
        %v1098 = vunpack.c.l.b16 %v988
        %v1099 = vunpack.c.l.b16 %v992
        %v1100 = vunpack.c.l.b16 %v995
        %v1101 = vunpack.c.l.b16 %v999
        %v1102 = vunpack.c.l.b16 %v1002
        %v1103 = vunpack.c.l.b16 %v1006
        %v1104 = vunpack.c.l.b16 %v1009
        %v1105 = vunpack.c.l.b16 %v1013
        %v1106 = vunpack.c.l.b16 %v1016
        %v1107 = vunpack.c.l.b16 %v1020
        %v1108 = vunpack.c.l.b16 %v1023
        %v1109 = vunpack.c.l.b16 %v1027
        %v1110 = vunpack.c.l.b16 %v1030
        %v1111 = vunpack.c.l.b16 %v1034
        %v1112 = vunpack.c.l.b16 %v1037
        %v1113 = vunpack.c.l.b16 %v1041
        %v1114 = vunpack.c.l.b16 %v1044
        %v1115 = vunpack.c.l.b16 %v1048
        %v1116 = vunpack.c.l.b16 %v1051
        %v1117 = vunpack.c.l.b16 %v1055
        %v1118 = vunpack.c.l.b16 %v1058
        %v1119 = vunpack.c.l.b16 %v1062
        %v1120 = vunpack.c.l.b16 %v1065
        %v1121 = vunpack.c.l.b16 %v1069
        %v1122 = vunpack.c.l.b16 %v1072
        %v1123 = vunpack.c.l.b16 %v1076
        %v1124 = vunpack.c.l.b16 %v1079
        %v1125 = vunpack.c.l.b16 %v1083
        %v1126 = vunpack.c.l.b16 %v1086
        %v1127 = vpack.c.b16 %v1096, %v1095
        %v1128 = vpack.c.b16 %v1098, %v1097
        %v1129 = vpack.c.b16 %v1100, %v1099
        %v1130 = vpack.c.b16 %v1102, %v1101
        %v1131 = vpack.c.b16 %v1104, %v1103
        %v1132 = vpack.c.b16 %v1106, %v1105
        %v1133 = vpack.c.b16 %v1108, %v1107
        %v1134 = vpack.c.b16 %v1110, %v1109
        %v1135 = vpack.c.b16 %v1112, %v1111
        %v1136 = vpack.c.b16 %v1114, %v1113
        %v1137 = vpack.c.b16 %v1116, %v1115
        %v1138 = vpack.c.b16 %v1118, %v1117
        %v1139 = vpack.c.b16 %v1120, %v1119
        %v1140 = vpack.c.b16 %v1122, %v1121
        %v1141 = vpack.c.b16 %v1124, %v1123
        %v1142 = vpack.c.b16 %v1126, %v1125
        %v1144 = vsel %vm682, %v1094, 0
        %v1147 = vsel %vm682, %v1127, 0
        %v1150 = vsel %vm682, %v1128, 0
        %v1153 = vsel %vm682, %v1129, 0
        %v1156 = vsel %vm682, %v1130, 0
        %v1159 = vsel %vm682, %v1131, 0
        %v1162 = vsel %vm682, %v1132, 0
        %v1165 = vsel %vm682, %v1133, 0
        %v1168 = vsel %vm682, %v1134, 0
        %v1171 = vsel %vm682, %v1135, 0
        %v1174 = vsel %vm682, %v1136, 0
        %v1177 = vsel %vm682, %v1137, 0
        %v1180 = vsel %vm682, %v1138, 0
        %v1183 = vsel %vm682, %v1139, 0
        %v1186 = vsel %vm682, %v1140, 0
        %v1189 = vsel %vm682, %v1141, 0
        %v1192 = vsel %vm682, %v1142, 0
        %1194 = vmatprep.subr.bf16.mxu0 0
        %1195 = vmatpush1.bf16.xpose.msra.mxu0 %v1168
        %1196 = vmatprep.subr.bf16.mxu0 0
        %1197 = vmatpush1.bf16.xpose.msra.mxu0 %v1165
        %1198 = vmatprep.subr.bf16.mxu0 0
        %1199 = vmatpush1.bf16.xpose.msra.mxu0 %v1162
        %1200 = vmatprep.subr.bf16.mxu0 0
        %1201 = vmatpush1.bf16.xpose.msra.mxu0 %v1159
        %1202 = vmatprep.subr.bf16.mxu0 0
        %1203 = vmatpush1.bf16.xpose.msra.mxu0 %v1156
        %1204 = vmatprep.subr.bf16.mxu0 0
        %1205 = vmatpush1.bf16.xpose.msra.mxu0 %v1153
        %1206 = vmatprep.subr.bf16.mxu0 0
        %1207 = vmatpush1.bf16.xpose.msra.mxu0 %v1150
        %1208 = vmatprep.subr.bf16.mxu0 0
        %1209 = vmatpush1.bf16.xpose.msra.mxu0 %v1147
        %1210 = vmatprep.subr.bf16.mxu0 0
        %1211 = vmatpush2.bf16.xpose.msra.mxu0 %v1192
        %1212 = vmatprep.subr.bf16.mxu0 0
        %1213 = vmatpush2.bf16.xpose.msra.mxu0 %v1189
        %1214 = vmatprep.subr.bf16.mxu0 0
        %1215 = vmatpush2.bf16.xpose.msra.mxu0 %v1186
        %1216 = vmatprep.subr.bf16.mxu0 0
        %1217 = vmatpush2.bf16.xpose.msra.mxu0 %v1183
        %1218 = vmatprep.subr.bf16.mxu0 0
        %1219 = vmatpush2.bf16.xpose.msra.mxu0 %v1180
        %1220 = vmatprep.subr.bf16.mxu0 0
        %1221 = vmatpush2.bf16.xpose.msra.mxu0 %v1177
        %1222 = vmatprep.subr.bf16.mxu0 0
        %1223 = vmatpush2.bf16.xpose.msra.mxu0 %v1174
        %1224 = vmatprep.subr.bf16.mxu0 0
        %1225 = vmatpush2.bf16.xpose.msra.mxu0 %v1171
        %1226 = vmatprep.mubr.bf16.mxu0 0
        %1227 = vmatmul.mubr.bf16.gmra.mxu0 %v1144
        %v1228 = vpop.f32.mrf.mxu0
        %v1229 = vadd.f32 0.0, %v1228
        %v1230 = vpop.f32.mrf.mxu0
        %v1231 = vadd.f32 0.0, %v1230
        %v1232 = vpop.f32.mrf.mxu0
        %v1233 = vadd.f32 0.0, %v1232
        %v1234 = vpop.f32.mrf.mxu0
        %v1235 = vadd.f32 0.0, %v1234
        %1236 = vdwg.mxu0
        %v1237 = vadd.f32 %v948, %v1229
        %v1238 = vadd.f32 %v950, %v1231
        %v1239 = vadd.f32 %v952, %v1233
        %v1240 = vadd.f32 %v954, %v1235
        %s1241 = sadd.s32 %s185, 1
        %s1242 = smul.u32 %s1241, 3
        %s1243 = smul.addr %s1242, 4
        %s1244 = scalar_lea.vmem %s182, %s1243
        %v1245 = vld [vmem:[%s1244] sm:$0xf]
        %v1246 = vld [vmem:[%s1244 + $0x4] sm:$0xf]
        %v1247 = vld [vmem:[%s1244 + $0x8] sm:$0x1]
        %v1248 = vld [vmem:[%s1244 + $0xc] sm:$0xf]
        %v1249 = vld [vmem:[%s1244 + $0x10] sm:$0xf]
        %v1250 = vld [vmem:[%s1244 + $0x14] sm:$0x1]
        %v1251 = vld [vmem:[%s1244 + $0x18] sm:$0xf]
        %v1252 = vld [vmem:[%s1244 + $0x1c] sm:$0xf]
        %v1253 = vld [vmem:[%s1244 + $0x20] sm:$0x1]
        %v1254 = vld [vmem:[%s1244 + $0x24] sm:$0xf]
        %v1255 = vld [vmem:[%s1244 + $0x28] sm:$0xf]
        %v1256 = vld [vmem:[%s1244 + $0x2c] sm:$0x1]
        %v1257 = vld [vmem:[%s1244 + $0x30] sm:$0xf]
        %v1258 = vld [vmem:[%s1244 + $0x34] sm:$0xf]
        %v1259 = vld [vmem:[%s1244 + $0x38] sm:$0x1]
        %v1260 = vld [vmem:[%s1244 + $0x3c] sm:$0xf]
        %v1261 = vld [vmem:[%s1244 + $0x40] sm:$0xf]
        %v1262 = vld [vmem:[%s1244 + $0x44] sm:$0x1]
        %v1263 = vld [vmem:[%s1244 + $0x48] sm:$0xf]
        %v1264 = vld [vmem:[%s1244 + $0x4c] sm:$0xf]
        %v1265 = vld [vmem:[%s1244 + $0x50] sm:$0x1]
        %v1266 = vld [vmem:[%s1244 + $0x54] sm:$0xf]
        %v1267 = vld [vmem:[%s1244 + $0x58] sm:$0xf]
        %v1268 = vld [vmem:[%s1244 + $0x5c] sm:$0x1]
        %v1269 = vld [vmem:[%s1244 + $0x60] sm:$0xf]
        %v1270 = vld [vmem:[%s1244 + $0x64] sm:$0xf]
        %v1271 = vld [vmem:[%s1244 + $0x68] sm:$0x1]
        %v1272 = vld [vmem:[%s1244 + $0x6c] sm:$0xf]
        %v1273 = vld [vmem:[%s1244 + $0x70] sm:$0xf]
        %v1274 = vld [vmem:[%s1244 + $0x74] sm:$0x1]
        %v1275 = vld [vmem:[%s1244 + $0x78] sm:$0xf]
        %v1276 = vld [vmem:[%s1244 + $0x7c] sm:$0xf]
        %v1277 = vld [vmem:[%s1244 + $0x80] sm:$0x1]
        %v1278 = vld [vmem:[%s1244 + $0x84] sm:$0xf]
        %v1279 = vld [vmem:[%s1244 + $0x88] sm:$0xf]
        %v1280 = vld [vmem:[%s1244 + $0x8c] sm:$0x1]
        %v1281 = vld [vmem:[%s1244 + $0x90] sm:$0xf]
        %v1282 = vld [vmem:[%s1244 + $0x94] sm:$0xf]
        %v1283 = vld [vmem:[%s1244 + $0x98] sm:$0x1]
        %v1284 = vld [vmem:[%s1244 + $0x9c] sm:$0xf]
        %v1285 = vld [vmem:[%s1244 + $0xa0] sm:$0xf]
        %v1286 = vld [vmem:[%s1244 + $0xa4] sm:$0x1]
        %v1287 = vld [vmem:[%s1244 + $0xa8] sm:$0xf]
        %v1288 = vld [vmem:[%s1244 + $0xac] sm:$0xf]
        %v1289 = vld [vmem:[%s1244 + $0xb0] sm:$0x1]
        %v1290 = vld [vmem:[%s1244 + $0xb4] sm:$0xf]
        %v1291 = vld [vmem:[%s1244 + $0xb8] sm:$0xf]
        %v1292 = vld [vmem:[%s1244 + $0xbc] sm:$0x1]
        %s1293 = scalar_lea.vmem %s1, 24
        %v1294 = vld [vmem:[%s1293] sm:$0xf]
        %v1295 = vld [vmem:[%s1293 + $0x4] sm:$0xf]
        %v1298 = vunpack.c.l.b16 %v1294
        %v1299 = vunpack.c.l.b16 %v1295
        %v1300 = vpack.c.b16 %v1299, %v1298
        %v1333 = vunpack.c.l.b16 %v1245
        %v1334 = vunpack.c.l.b16 %v1246
        %v1335 = vunpack.c.l.b16 %v1248
        %v1336 = vunpack.c.l.b16 %v1249
        %v1337 = vunpack.c.l.b16 %v1251
        %v1338 = vunpack.c.l.b16 %v1252
        %v1339 = vunpack.c.l.b16 %v1254
        %v1340 = vunpack.c.l.b16 %v1255
        %v1341 = vunpack.c.l.b16 %v1257
        %v1342 = vunpack.c.l.b16 %v1258
        %v1343 = vunpack.c.l.b16 %v1260
        %v1344 = vunpack.c.l.b16 %v1261
        %v1345 = vunpack.c.l.b16 %v1263
        %v1346 = vunpack.c.l.b16 %v1264
        %v1347 = vunpack.c.l.b16 %v1266
        %v1348 = vunpack.c.l.b16 %v1267
        %v1349 = vunpack.c.l.b16 %v1269
        %v1350 = vunpack.c.l.b16 %v1270
        %v1351 = vunpack.c.l.b16 %v1272
        %v1352 = vunpack.c.l.b16 %v1273
        %v1353 = vunpack.c.l.b16 %v1275
        %v1354 = vunpack.c.l.b16 %v1276
        %v1355 = vunpack.c.l.b16 %v1278
        %v1356 = vunpack.c.l.b16 %v1279
        %v1357 = vunpack.c.l.b16 %v1281
        %v1358 = vunpack.c.l.b16 %v1282
        %v1359 = vunpack.c.l.b16 %v1284
        %v1360 = vunpack.c.l.b16 %v1285
        %v1361 = vunpack.c.l.b16 %v1287
        %v1362 = vunpack.c.l.b16 %v1288
        %v1363 = vunpack.c.l.b16 %v1290
        %v1364 = vunpack.c.l.b16 %v1291
        %v1365 = vpack.c.b16 %v1334, %v1333
        %v1366 = vpack.c.b16 %v1336, %v1335
        %v1367 = vpack.c.b16 %v1338, %v1337
        %v1368 = vpack.c.b16 %v1340, %v1339
        %v1369 = vpack.c.b16 %v1342, %v1341
        %v1370 = vpack.c.b16 %v1344, %v1343
        %v1371 = vpack.c.b16 %v1346, %v1345
        %v1372 = vpack.c.b16 %v1348, %v1347
        %v1373 = vpack.c.b16 %v1350, %v1349
        %v1374 = vpack.c.b16 %v1352, %v1351
        %v1375 = vpack.c.b16 %v1354, %v1353
        %v1376 = vpack.c.b16 %v1356, %v1355
        %v1377 = vpack.c.b16 %v1358, %v1357
        %v1378 = vpack.c.b16 %v1360, %v1359
        %v1379 = vpack.c.b16 %v1362, %v1361
        %v1380 = vpack.c.b16 %v1364, %v1363
        %v1382 = vsel %vm682, %v1300, 0
        %v1385 = vsel %vm682, %v1365, 0
        %v1388 = vsel %vm682, %v1366, 0
        %v1391 = vsel %vm682, %v1367, 0
        %v1394 = vsel %vm682, %v1368, 0
        %v1397 = vsel %vm682, %v1369, 0
        %v1400 = vsel %vm682, %v1370, 0
        %v1403 = vsel %vm682, %v1371, 0
        %v1406 = vsel %vm682, %v1372, 0
        %v1409 = vsel %vm682, %v1373, 0
        %v1412 = vsel %vm682, %v1374, 0
        %v1415 = vsel %vm682, %v1375, 0
        %v1418 = vsel %vm682, %v1376, 0
        %v1421 = vsel %vm682, %v1377, 0
        %v1424 = vsel %vm682, %v1378, 0
        %v1427 = vsel %vm682, %v1379, 0
        %v1430 = vsel %vm682, %v1380, 0
        %1432 = vmatprep.subr.bf16.mxu0 0
        %1433 = vmatpush1.bf16.xpose.msra.mxu0 %v1406
        %1434 = vmatprep.subr.bf16.mxu0 0
        %1435 = vmatpush1.bf16.xpose.msra.mxu0 %v1403
        %1436 = vmatprep.subr.bf16.mxu0 0
        %1437 = vmatpush1.bf16.xpose.msra.mxu0 %v1400
        %1438 = vmatprep.subr.bf16.mxu0 0
        %1439 = vmatpush1.bf16.xpose.msra.mxu0 %v1397
        %1440 = vmatprep.subr.bf16.mxu0 0
        %1441 = vmatpush1.bf16.xpose.msra.mxu0 %v1394
        %1442 = vmatprep.subr.bf16.mxu0 0
        %1443 = vmatpush1.bf16.xpose.msra.mxu0 %v1391
        %1444 = vmatprep.subr.bf16.mxu0 0
        %1445 = vmatpush1.bf16.xpose.msra.mxu0 %v1388
        %1446 = vmatprep.subr.bf16.mxu0 0
        %1447 = vmatpush1.bf16.xpose.msra.mxu0 %v1385
        %1448 = vmatprep.subr.bf16.mxu0 0
        %1449 = vmatpush2.bf16.xpose.msra.mxu0 %v1430
        %1450 = vmatprep.subr.bf16.mxu0 0
        %1451 = vmatpush2.bf16.xpose.msra.mxu0 %v1427
        %1452 = vmatprep.subr.bf16.mxu0 0
        %1453 = vmatpush2.bf16.xpose.msra.mxu0 %v1424
        %1454 = vmatprep.subr.bf16.mxu0 0
        %1455 = vmatpush2.bf16.xpose.msra.mxu0 %v1421
        %1456 = vmatprep.subr.bf16.mxu0 0
        %1457 = vmatpush2.bf16.xpose.msra.mxu0 %v1418
        %1458 = vmatprep.subr.bf16.mxu0 0
        %1459 = vmatpush2.bf16.xpose.msra.mxu0 %v1415
        %1460 = vmatprep.subr.bf16.mxu0 0
        %1461 = vmatpush2.bf16.xpose.msra.mxu0 %v1412
        %1462 = vmatprep.subr.bf16.mxu0 0
        %1463 = vmatpush2.bf16.xpose.msra.mxu0 %v1409
        %1464 = vmatprep.mubr.bf16.mxu0 0
        %1465 = vmatmul.mubr.bf16.gmra.mxu0 %v1382
        %v1466 = vpop.f32.mrf.mxu0
        %v1467 = vadd.f32 0.0, %v1466
        %v1468 = vpop.f32.mrf.mxu0
        %v1469 = vadd.f32 0.0, %v1468
        %v1470 = vpop.f32.mrf.mxu0
        %v1471 = vadd.f32 0.0, %v1470
        %v1472 = vpop.f32.mrf.mxu0
        %v1473 = vadd.f32 0.0, %v1472
        %1474 = vdwg.mxu0
        %v1475 = vadd.f32 %v1237, %v1467
        %v1476 = vadd.f32 %v1238, %v1469
        %v1477 = vadd.f32 %v1239, %v1471
        %v1478 = vadd.f32 %v1240, %v1473
        %v1480 = vshrl.u32 %v1245, 16
        %v1482 = vrot.slane %v1480, 4
        %v1483 = vshll.u32 %v1245, 16
        %v1485 = vrot.slane %v1483, 5
        %v1486 = vor.u32 %v1482, %v1485
        %v1487 = vrot.slane %v1486, 4
        %v1489 = vshll.u32 %v1246, 16
        %v1491 = vrot.slane %v1489, 5
        %v1492 = vsel %vm241, %v1487, %v1491
        %v1493 = vshrl.u32 %v1246, 16
        %v1495 = vrot.slane %v1493, 4
        %v1496 = vor.u32 %v1495, %v1491
        %v1497 = vrot.slane %v1496, 4
        %v1499 = vshll.u32 %v1247, 16
        %v1501 = vrot.slane %v1499, 5
        %v1502 = vsel %vm241, %v1497, %v1501
        %v1504 = vshrl.u32 %v1248, 16
        %v1506 = vrot.slane %v1504, 4
        %v1507 = vshll.u32 %v1248, 16
        %v1509 = vrot.slane %v1507, 5
        %v1510 = vor.u32 %v1506, %v1509
        %v1511 = vrot.slane %v1510, 4
        %v1513 = vshll.u32 %v1249, 16
        %v1515 = vrot.slane %v1513, 5
        %v1516 = vsel %vm241, %v1511, %v1515
        %v1517 = vshrl.u32 %v1249, 16
        %v1519 = vrot.slane %v1517, 4
        %v1520 = vor.u32 %v1519, %v1515
        %v1521 = vrot.slane %v1520, 4
        %v1523 = vshll.u32 %v1250, 16
        %v1525 = vrot.slane %v1523, 5
        %v1526 = vsel %vm241, %v1521, %v1525
        %v1528 = vshrl.u32 %v1251, 16
        %v1530 = vrot.slane %v1528, 4
        %v1531 = vshll.u32 %v1251, 16
        %v1533 = vrot.slane %v1531, 5
        %v1534 = vor.u32 %v1530, %v1533
        %v1535 = vrot.slane %v1534, 4
        %v1537 = vshll.u32 %v1252, 16
        %v1539 = vrot.slane %v1537, 5
        %v1540 = vsel %vm241, %v1535, %v1539
        %v1541 = vshrl.u32 %v1252, 16
        %v1543 = vrot.slane %v1541, 4
        %v1544 = vor.u32 %v1543, %v1539
        %v1545 = vrot.slane %v1544, 4
        %v1547 = vshll.u32 %v1253, 16
        %v1549 = vrot.slane %v1547, 5
        %v1550 = vsel %vm241, %v1545, %v1549
        %v1552 = vshrl.u32 %v1254, 16
        %v1554 = vrot.slane %v1552, 4
        %v1555 = vshll.u32 %v1254, 16
        %v1557 = vrot.slane %v1555, 5
        %v1558 = vor.u32 %v1554, %v1557
        %v1559 = vrot.slane %v1558, 4
        %v1561 = vshll.u32 %v1255, 16
        %v1563 = vrot.slane %v1561, 5
        %v1564 = vsel %vm241, %v1559, %v1563
        %v1565 = vshrl.u32 %v1255, 16
        %v1567 = vrot.slane %v1565, 4
        %v1568 = vor.u32 %v1567, %v1563
        %v1569 = vrot.slane %v1568, 4
        %v1571 = vshll.u32 %v1256, 16
        %v1573 = vrot.slane %v1571, 5
        %v1574 = vsel %vm241, %v1569, %v1573
        %v1576 = vshrl.u32 %v1257, 16
        %v1578 = vrot.slane %v1576, 4
        %v1579 = vshll.u32 %v1257, 16
        %v1581 = vrot.slane %v1579, 5
        %v1582 = vor.u32 %v1578, %v1581
        %v1583 = vrot.slane %v1582, 4
        %v1585 = vshll.u32 %v1258, 16
        %v1587 = vrot.slane %v1585, 5
        %v1588 = vsel %vm241, %v1583, %v1587
        %v1589 = vshrl.u32 %v1258, 16
        %v1591 = vrot.slane %v1589, 4
        %v1592 = vor.u32 %v1591, %v1587
        %v1593 = vrot.slane %v1592, 4
        %v1595 = vshll.u32 %v1259, 16
        %v1597 = vrot.slane %v1595, 5
        %v1598 = vsel %vm241, %v1593, %v1597
        %v1600 = vshrl.u32 %v1260, 16
        %v1602 = vrot.slane %v1600, 4
        %v1603 = vshll.u32 %v1260, 16
        %v1605 = vrot.slane %v1603, 5
        %v1606 = vor.u32 %v1602, %v1605
        %v1607 = vrot.slane %v1606, 4
        %v1609 = vshll.u32 %v1261, 16
        %v1611 = vrot.slane %v1609, 5
        %v1612 = vsel %vm241, %v1607, %v1611
        %v1613 = vshrl.u32 %v1261, 16
        %v1615 = vrot.slane %v1613, 4
        %v1616 = vor.u32 %v1615, %v1611
        %v1617 = vrot.slane %v1616, 4
        %v1619 = vshll.u32 %v1262, 16
        %v1621 = vrot.slane %v1619, 5
        %v1622 = vsel %vm241, %v1617, %v1621
        %v1624 = vshrl.u32 %v1263, 16
        %v1626 = vrot.slane %v1624, 4
        %v1627 = vshll.u32 %v1263, 16
        %v1629 = vrot.slane %v1627, 5
        %v1630 = vor.u32 %v1626, %v1629
        %v1631 = vrot.slane %v1630, 4
        %v1633 = vshll.u32 %v1264, 16
        %v1635 = vrot.slane %v1633, 5
        %v1636 = vsel %vm241, %v1631, %v1635
        %v1637 = vshrl.u32 %v1264, 16
        %v1639 = vrot.slane %v1637, 4
        %v1640 = vor.u32 %v1639, %v1635
        %v1641 = vrot.slane %v1640, 4
        %v1643 = vshll.u32 %v1265, 16
        %v1645 = vrot.slane %v1643, 5
        %v1646 = vsel %vm241, %v1641, %v1645
        %v1648 = vshrl.u32 %v1266, 16
        %v1650 = vrot.slane %v1648, 4
        %v1651 = vshll.u32 %v1266, 16
        %v1653 = vrot.slane %v1651, 5
        %v1654 = vor.u32 %v1650, %v1653
        %v1655 = vrot.slane %v1654, 4
        %v1657 = vshll.u32 %v1267, 16
        %v1659 = vrot.slane %v1657, 5
        %v1660 = vsel %vm241, %v1655, %v1659
        %v1661 = vshrl.u32 %v1267, 16
        %v1663 = vrot.slane %v1661, 4
        %v1664 = vor.u32 %v1663, %v1659
        %v1665 = vrot.slane %v1664, 4
        %v1667 = vshll.u32 %v1268, 16
        %v1669 = vrot.slane %v1667, 5
        %v1670 = vsel %vm241, %v1665, %v1669
        %v1672 = vshrl.u32 %v1269, 16
        %v1674 = vrot.slane %v1672, 4
        %v1675 = vshll.u32 %v1269, 16
        %v1677 = vrot.slane %v1675, 5
        %v1678 = vor.u32 %v1674, %v1677
        %v1679 = vrot.slane %v1678, 4
        %v1681 = vshll.u32 %v1270, 16
        %v1683 = vrot.slane %v1681, 5
        %v1684 = vsel %vm241, %v1679, %v1683
        %v1685 = vshrl.u32 %v1270, 16
        %v1687 = vrot.slane %v1685, 4
        %v1688 = vor.u32 %v1687, %v1683
        %v1689 = vrot.slane %v1688, 4
        %v1691 = vshll.u32 %v1271, 16
        %v1693 = vrot.slane %v1691, 5
        %v1694 = vsel %vm241, %v1689, %v1693
        %v1696 = vshrl.u32 %v1272, 16
        %v1698 = vrot.slane %v1696, 4
        %v1699 = vshll.u32 %v1272, 16
        %v1701 = vrot.slane %v1699, 5
        %v1702 = vor.u32 %v1698, %v1701
        %v1703 = vrot.slane %v1702, 4
        %v1705 = vshll.u32 %v1273, 16
        %v1707 = vrot.slane %v1705, 5
        %v1708 = vsel %vm241, %v1703, %v1707
        %v1709 = vshrl.u32 %v1273, 16
        %v1711 = vrot.slane %v1709, 4
        %v1712 = vor.u32 %v1711, %v1707
        %v1713 = vrot.slane %v1712, 4
        %v1715 = vshll.u32 %v1274, 16
        %v1717 = vrot.slane %v1715, 5
        %v1718 = vsel %vm241, %v1713, %v1717
        %v1720 = vshrl.u32 %v1275, 16
        %v1722 = vrot.slane %v1720, 4
        %v1723 = vshll.u32 %v1275, 16
        %v1725 = vrot.slane %v1723, 5
        %v1726 = vor.u32 %v1722, %v1725
        %v1727 = vrot.slane %v1726, 4
        %v1729 = vshll.u32 %v1276, 16
        %v1731 = vrot.slane %v1729, 5
        %v1732 = vsel %vm241, %v1727, %v1731
        %v1733 = vshrl.u32 %v1276, 16
        %v1735 = vrot.slane %v1733, 4
        %v1736 = vor.u32 %v1735, %v1731
        %v1737 = vrot.slane %v1736, 4
        %v1739 = vshll.u32 %v1277, 16
        %v1741 = vrot.slane %v1739, 5
        %v1742 = vsel %vm241, %v1737, %v1741
        %v1744 = vshrl.u32 %v1278, 16
        %v1746 = vrot.slane %v1744, 4
        %v1747 = vshll.u32 %v1278, 16
        %v1749 = vrot.slane %v1747, 5
        %v1750 = vor.u32 %v1746, %v1749
        %v1751 = vrot.slane %v1750, 4
        %v1753 = vshll.u32 %v1279, 16
        %v1755 = vrot.slane %v1753, 5
        %v1756 = vsel %vm241, %v1751, %v1755
        %v1757 = vshrl.u32 %v1279, 16
        %v1759 = vrot.slane %v1757, 4
        %v1760 = vor.u32 %v1759, %v1755
        %v1761 = vrot.slane %v1760, 4
        %v1763 = vshll.u32 %v1280, 16
        %v1765 = vrot.slane %v1763, 5
        %v1766 = vsel %vm241, %v1761, %v1765
        %v1768 = vshrl.u32 %v1281, 16
        %v1770 = vrot.slane %v1768, 4
        %v1771 = vshll.u32 %v1281, 16
        %v1773 = vrot.slane %v1771, 5
        %v1774 = vor.u32 %v1770, %v1773
        %v1775 = vrot.slane %v1774, 4
        %v1777 = vshll.u32 %v1282, 16
        %v1779 = vrot.slane %v1777, 5
        %v1780 = vsel %vm241, %v1775, %v1779
        %v1781 = vshrl.u32 %v1282, 16
        %v1783 = vrot.slane %v1781, 4
        %v1784 = vor.u32 %v1783, %v1779
        %v1785 = vrot.slane %v1784, 4
        %v1787 = vshll.u32 %v1283, 16
        %v1789 = vrot.slane %v1787, 5
        %v1790 = vsel %vm241, %v1785, %v1789
        %v1792 = vshrl.u32 %v1284, 16
        %v1794 = vrot.slane %v1792, 4
        %v1795 = vshll.u32 %v1284, 16
        %v1797 = vrot.slane %v1795, 5
        %v1798 = vor.u32 %v1794, %v1797
        %v1799 = vrot.slane %v1798, 4
        %v1801 = vshll.u32 %v1285, 16
        %v1803 = vrot.slane %v1801, 5
        %v1804 = vsel %vm241, %v1799, %v1803
        %v1805 = vshrl.u32 %v1285, 16
        %v1807 = vrot.slane %v1805, 4
        %v1808 = vor.u32 %v1807, %v1803
        %v1809 = vrot.slane %v1808, 4
        %v1811 = vshll.u32 %v1286, 16
        %v1813 = vrot.slane %v1811, 5
        %v1814 = vsel %vm241, %v1809, %v1813
        %v1816 = vshrl.u32 %v1287, 16
        %v1818 = vrot.slane %v1816, 4
        %v1819 = vshll.u32 %v1287, 16
        %v1821 = vrot.slane %v1819, 5
        %v1822 = vor.u32 %v1818, %v1821
        %v1823 = vrot.slane %v1822, 4
        %v1825 = vshll.u32 %v1288, 16
        %v1827 = vrot.slane %v1825, 5
        %v1828 = vsel %vm241, %v1823, %v1827
        %v1829 = vshrl.u32 %v1288, 16
        %v1831 = vrot.slane %v1829, 4
        %v1832 = vor.u32 %v1831, %v1827
        %v1833 = vrot.slane %v1832, 4
        %v1835 = vshll.u32 %v1289, 16
        %v1837 = vrot.slane %v1835, 5
        %v1838 = vsel %vm241, %v1833, %v1837
        %v1840 = vshrl.u32 %v1290, 16
        %v1842 = vrot.slane %v1840, 4
        %v1843 = vshll.u32 %v1290, 16
        %v1845 = vrot.slane %v1843, 5
        %v1846 = vor.u32 %v1842, %v1845
        %v1847 = vrot.slane %v1846, 4
        %v1849 = vshll.u32 %v1291, 16
        %v1851 = vrot.slane %v1849, 5
        %v1852 = vsel %vm241, %v1847, %v1851
        %v1853 = vshrl.u32 %v1291, 16
        %v1855 = vrot.slane %v1853, 4
        %v1856 = vor.u32 %v1855, %v1851
        %v1857 = vrot.slane %v1856, 4
        %v1859 = vshll.u32 %v1292, 16
        %v1861 = vrot.slane %v1859, 5
        %v1862 = vsel %vm241, %v1857, %v1861
        %s1863 = scalar_lea.vmem %s1, 32
        %v1864 = vld [vmem:[%s1863] sm:$0xf]
        %v1865 = vld [vmem:[%s1863 + $0x4] sm:$0xf]
        %v1868 = vunpack.c.l.b16 %v1864
        %v1869 = vunpack.c.l.b16 %v1865
        %v1870 = vpack.c.b16 %v1869, %v1868
        %v1871 = vunpack.c.l.b16 %v1492
        %v1872 = vunpack.c.l.b16 %v1502
        %v1873 = vunpack.c.l.b16 %v1516
        %v1874 = vunpack.c.l.b16 %v1526
        %v1875 = vunpack.c.l.b16 %v1540
        %v1876 = vunpack.c.l.b16 %v1550
        %v1877 = vunpack.c.l.b16 %v1564
        %v1878 = vunpack.c.l.b16 %v1574
        %v1879 = vunpack.c.l.b16 %v1588
        %v1880 = vunpack.c.l.b16 %v1598
        %v1881 = vunpack.c.l.b16 %v1612
        %v1882 = vunpack.c.l.b16 %v1622
        %v1883 = vunpack.c.l.b16 %v1636
        %v1884 = vunpack.c.l.b16 %v1646
        %v1885 = vunpack.c.l.b16 %v1660
        %v1886 = vunpack.c.l.b16 %v1670
        %v1887 = vunpack.c.l.b16 %v1684
        %v1888 = vunpack.c.l.b16 %v1694
        %v1889 = vunpack.c.l.b16 %v1708
        %v1890 = vunpack.c.l.b16 %v1718
        %v1891 = vunpack.c.l.b16 %v1732
        %v1892 = vunpack.c.l.b16 %v1742
        %v1893 = vunpack.c.l.b16 %v1756
        %v1894 = vunpack.c.l.b16 %v1766
        %v1895 = vunpack.c.l.b16 %v1780
        %v1896 = vunpack.c.l.b16 %v1790
        %v1897 = vunpack.c.l.b16 %v1804
        %v1898 = vunpack.c.l.b16 %v1814
        %v1899 = vunpack.c.l.b16 %v1828
        %v1900 = vunpack.c.l.b16 %v1838
        %v1901 = vunpack.c.l.b16 %v1852
        %v1902 = vunpack.c.l.b16 %v1862
        %v1903 = vpack.c.b16 %v1872, %v1871
        %v1904 = vpack.c.b16 %v1874, %v1873
        %v1905 = vpack.c.b16 %v1876, %v1875
        %v1906 = vpack.c.b16 %v1878, %v1877
        %v1907 = vpack.c.b16 %v1880, %v1879
        %v1908 = vpack.c.b16 %v1882, %v1881
        %v1909 = vpack.c.b16 %v1884, %v1883
        %v1910 = vpack.c.b16 %v1886, %v1885
        %v1911 = vpack.c.b16 %v1888, %v1887
        %v1912 = vpack.c.b16 %v1890, %v1889
        %v1913 = vpack.c.b16 %v1892, %v1891
        %v1914 = vpack.c.b16 %v1894, %v1893
        %v1915 = vpack.c.b16 %v1896, %v1895
        %v1916 = vpack.c.b16 %v1898, %v1897
        %v1917 = vpack.c.b16 %v1900, %v1899
        %v1918 = vpack.c.b16 %v1902, %v1901
        %v1920 = vsel %vm682, %v1870, 0
        %v1923 = vsel %vm682, %v1903, 0
        %v1926 = vsel %vm682, %v1904, 0
        %v1929 = vsel %vm682, %v1905, 0
        %v1932 = vsel %vm682, %v1906, 0
        %v1935 = vsel %vm682, %v1907, 0
        %v1938 = vsel %vm682, %v1908, 0
        %v1941 = vsel %vm682, %v1909, 0
        %v1944 = vsel %vm682, %v1910, 0
        %v1947 = vsel %vm682, %v1911, 0
        %v1950 = vsel %vm682, %v1912, 0
        %v1953 = vsel %vm682, %v1913, 0
        %v1956 = vsel %vm682, %v1914, 0
        %v1959 = vsel %vm682, %v1915, 0
        %v1962 = vsel %vm682, %v1916, 0
        %v1965 = vsel %vm682, %v1917, 0
        %v1968 = vsel %vm682, %v1918, 0
        %1970 = vmatprep.subr.bf16.mxu0 0
        %1971 = vmatpush1.bf16.xpose.msra.mxu0 %v1944
        %1972 = vmatprep.subr.bf16.mxu0 0
        %1973 = vmatpush1.bf16.xpose.msra.mxu0 %v1941
        %1974 = vmatprep.subr.bf16.mxu0 0
        %1975 = vmatpush1.bf16.xpose.msra.mxu0 %v1938
        %1976 = vmatprep.subr.bf16.mxu0 0
        %1977 = vmatpush1.bf16.xpose.msra.mxu0 %v1935
        %1978 = vmatprep.subr.bf16.mxu0 0
        %1979 = vmatpush1.bf16.xpose.msra.mxu0 %v1932
        %1980 = vmatprep.subr.bf16.mxu0 0
        %1981 = vmatpush1.bf16.xpose.msra.mxu0 %v1929
        %1982 = vmatprep.subr.bf16.mxu0 0
        %1983 = vmatpush1.bf16.xpose.msra.mxu0 %v1926
        %1984 = vmatprep.subr.bf16.mxu0 0
        %1985 = vmatpush1.bf16.xpose.msra.mxu0 %v1923
        %1986 = vmatprep.subr.bf16.mxu0 0
        %1987 = vmatpush2.bf16.xpose.msra.mxu0 %v1968
        %1988 = vmatprep.subr.bf16.mxu0 0
        %1989 = vmatpush2.bf16.xpose.msra.mxu0 %v1965
        %1990 = vmatprep.subr.bf16.mxu0 0
        %1991 = vmatpush2.bf16.xpose.msra.mxu0 %v1962
        %1992 = vmatprep.subr.bf16.mxu0 0
        %1993 = vmatpush2.bf16.xpose.msra.mxu0 %v1959
        %1994 = vmatprep.subr.bf16.mxu0 0
        %1995 = vmatpush2.bf16.xpose.msra.mxu0 %v1956
        %1996 = vmatprep.subr.bf16.mxu0 0
        %1997 = vmatpush2.bf16.xpose.msra.mxu0 %v1953
        %1998 = vmatprep.subr.bf16.mxu0 0
        %1999 = vmatpush2.bf16.xpose.msra.mxu0 %v1950
        %2000 = vmatprep.subr.bf16.mxu0 0
        %2001 = vmatpush2.bf16.xpose.msra.mxu0 %v1947
        %2002 = vmatprep.mubr.bf16.mxu0 0
        %2003 = vmatmul.mubr.bf16.gmra.mxu0 %v1920
        %v2004 = vpop.f32.mrf.mxu0
        %v2005 = vadd.f32 0.0, %v2004
        %v2006 = vpop.f32.mrf.mxu0
        %v2007 = vadd.f32 0.0, %v2006
        %v2008 = vpop.f32.mrf.mxu0
        %v2009 = vadd.f32 0.0, %v2008
        %v2010 = vpop.f32.mrf.mxu0
        %v2011 = vadd.f32 0.0, %v2010
        %2012 = vdwg.mxu0
        %v2013 = vadd.f32 %v1475, %v2005
        %v2014 = vadd.f32 %v1476, %v2007
        %v2015 = vadd.f32 %v1477, %v2009
        %v2016 = vadd.f32 %v1478, %v2011
        %v2033 = vrot.slane %v1245, 5
        %v2034 = vrot.slane %v2033, 4
        %v2035 = vrot.slane %v1246, 5
        %v2036 = vsel %vm974, %v2034, %v2035
        %v2037 = vrot.slane %v2035, 4
        %v2038 = vrot.slane %v1247, 5
        %v2039 = vsel %vm974, %v2037, %v2038
        %v2040 = vrot.slane %v1248, 5
        %v2041 = vrot.slane %v2040, 4
        %v2042 = vrot.slane %v1249, 5
        %v2043 = vsel %vm974, %v2041, %v2042
        %v2044 = vrot.slane %v2042, 4
        %v2045 = vrot.slane %v1250, 5
        %v2046 = vsel %vm974, %v2044, %v2045
        %v2047 = vrot.slane %v1251, 5
        %v2048 = vrot.slane %v2047, 4
        %v2049 = vrot.slane %v1252, 5
        %v2050 = vsel %vm974, %v2048, %v2049
        %v2051 = vrot.slane %v2049, 4
        %v2052 = vrot.slane %v1253, 5
        %v2053 = vsel %vm974, %v2051, %v2052
        %v2054 = vrot.slane %v1254, 5
        %v2055 = vrot.slane %v2054, 4
        %v2056 = vrot.slane %v1255, 5
        %v2057 = vsel %vm974, %v2055, %v2056
        %v2058 = vrot.slane %v2056, 4
        %v2059 = vrot.slane %v1256, 5
        %v2060 = vsel %vm974, %v2058, %v2059
        %v2061 = vrot.slane %v1257, 5
        %v2062 = vrot.slane %v2061, 4
        %v2063 = vrot.slane %v1258, 5
        %v2064 = vsel %vm974, %v2062, %v2063
        %v2065 = vrot.slane %v2063, 4
        %v2066 = vrot.slane %v1259, 5
        %v2067 = vsel %vm974, %v2065, %v2066
        %v2068 = vrot.slane %v1260, 5
        %v2069 = vrot.slane %v2068, 4
        %v2070 = vrot.slane %v1261, 5
        %v2071 = vsel %vm974, %v2069, %v2070
        %v2072 = vrot.slane %v2070, 4
        %v2073 = vrot.slane %v1262, 5
        %v2074 = vsel %vm974, %v2072, %v2073
        %v2075 = vrot.slane %v1263, 5
        %v2076 = vrot.slane %v2075, 4
        %v2077 = vrot.slane %v1264, 5
        %v2078 = vsel %vm974, %v2076, %v2077
        %v2079 = vrot.slane %v2077, 4
        %v2080 = vrot.slane %v1265, 5
        %v2081 = vsel %vm974, %v2079, %v2080
        %v2082 = vrot.slane %v1266, 5
        %v2083 = vrot.slane %v2082, 4
        %v2084 = vrot.slane %v1267, 5
        %v2085 = vsel %vm974, %v2083, %v2084
        %v2086 = vrot.slane %v2084, 4
        %v2087 = vrot.slane %v1268, 5
        %v2088 = vsel %vm974, %v2086, %v2087
        %v2089 = vrot.slane %v1269, 5
        %v2090 = vrot.slane %v2089, 4
        %v2091 = vrot.slane %v1270, 5
        %v2092 = vsel %vm974, %v2090, %v2091
        %v2093 = vrot.slane %v2091, 4
        %v2094 = vrot.slane %v1271, 5
        %v2095 = vsel %vm974, %v2093, %v2094
        %v2096 = vrot.slane %v1272, 5
        %v2097 = vrot.slane %v2096, 4
        %v2098 = vrot.slane %v1273, 5
        %v2099 = vsel %vm974, %v2097, %v2098
        %v2100 = vrot.slane %v2098, 4
        %v2101 = vrot.slane %v1274, 5
        %v2102 = vsel %vm974, %v2100, %v2101
        %v2103 = vrot.slane %v1275, 5
        %v2104 = vrot.slane %v2103, 4
        %v2105 = vrot.slane %v1276, 5
        %v2106 = vsel %vm974, %v2104, %v2105
        %v2107 = vrot.slane %v2105, 4
        %v2108 = vrot.slane %v1277, 5
        %v2109 = vsel %vm974, %v2107, %v2108
        %v2110 = vrot.slane %v1278, 5
        %v2111 = vrot.slane %v2110, 4
        %v2112 = vrot.slane %v1279, 5
        %v2113 = vsel %vm974, %v2111, %v2112
        %v2114 = vrot.slane %v2112, 4
        %v2115 = vrot.slane %v1280, 5
        %v2116 = vsel %vm974, %v2114, %v2115
        %v2117 = vrot.slane %v1281, 5
        %v2118 = vrot.slane %v2117, 4
        %v2119 = vrot.slane %v1282, 5
        %v2120 = vsel %vm974, %v2118, %v2119
        %v2121 = vrot.slane %v2119, 4
        %v2122 = vrot.slane %v1283, 5
        %v2123 = vsel %vm974, %v2121, %v2122
        %v2124 = vrot.slane %v1284, 5
        %v2125 = vrot.slane %v2124, 4
        %v2126 = vrot.slane %v1285, 5
        %v2127 = vsel %vm974, %v2125, %v2126
        %v2128 = vrot.slane %v2126, 4
        %v2129 = vrot.slane %v1286, 5
        %v2130 = vsel %vm974, %v2128, %v2129
        %v2131 = vrot.slane %v1287, 5
        %v2132 = vrot.slane %v2131, 4
        %v2133 = vrot.slane %v1288, 5
        %v2134 = vsel %vm974, %v2132, %v2133
        %v2135 = vrot.slane %v2133, 4
        %v2136 = vrot.slane %v1289, 5
        %v2137 = vsel %vm974, %v2135, %v2136
        %v2138 = vrot.slane %v1290, 5
        %v2139 = vrot.slane %v2138, 4
        %v2140 = vrot.slane %v1291, 5
        %v2141 = vsel %vm974, %v2139, %v2140
        %v2142 = vrot.slane %v2140, 4
        %v2143 = vrot.slane %v1292, 5
        %v2144 = vsel %vm974, %v2142, %v2143
        %s2145 = scalar_lea.vmem %s1, 40
        %v2146 = vld [vmem:[%s2145] sm:$0xf]
        %v2147 = vld [vmem:[%s2145 + $0x4] sm:$0xf]
        %v2150 = vunpack.c.l.b16 %v2146
        %v2151 = vunpack.c.l.b16 %v2147
        %v2152 = vpack.c.b16 %v2151, %v2150
        %v2153 = vunpack.c.l.b16 %v2036
        %v2154 = vunpack.c.l.b16 %v2039
        %v2155 = vunpack.c.l.b16 %v2043
        %v2156 = vunpack.c.l.b16 %v2046
        %v2157 = vunpack.c.l.b16 %v2050
        %v2158 = vunpack.c.l.b16 %v2053
        %v2159 = vunpack.c.l.b16 %v2057
        %v2160 = vunpack.c.l.b16 %v2060
        %v2161 = vunpack.c.l.b16 %v2064
        %v2162 = vunpack.c.l.b16 %v2067
        %v2163 = vunpack.c.l.b16 %v2071
        %v2164 = vunpack.c.l.b16 %v2074
        %v2165 = vunpack.c.l.b16 %v2078
        %v2166 = vunpack.c.l.b16 %v2081
        %v2167 = vunpack.c.l.b16 %v2085
        %v2168 = vunpack.c.l.b16 %v2088
        %v2169 = vunpack.c.l.b16 %v2092
        %v2170 = vunpack.c.l.b16 %v2095
        %v2171 = vunpack.c.l.b16 %v2099
        %v2172 = vunpack.c.l.b16 %v2102
        %v2173 = vunpack.c.l.b16 %v2106
        %v2174 = vunpack.c.l.b16 %v2109
        %v2175 = vunpack.c.l.b16 %v2113
        %v2176 = vunpack.c.l.b16 %v2116
        %v2177 = vunpack.c.l.b16 %v2120
        %v2178 = vunpack.c.l.b16 %v2123
        %v2179 = vunpack.c.l.b16 %v2127
        %v2180 = vunpack.c.l.b16 %v2130
        %v2181 = vunpack.c.l.b16 %v2134
        %v2182 = vunpack.c.l.b16 %v2137
        %v2183 = vunpack.c.l.b16 %v2141
        %v2184 = vunpack.c.l.b16 %v2144
        %v2185 = vpack.c.b16 %v2154, %v2153
        %v2186 = vpack.c.b16 %v2156, %v2155
        %v2187 = vpack.c.b16 %v2158, %v2157
        %v2188 = vpack.c.b16 %v2160, %v2159
        %v2189 = vpack.c.b16 %v2162, %v2161
        %v2190 = vpack.c.b16 %v2164, %v2163
        %v2191 = vpack.c.b16 %v2166, %v2165
        %v2192 = vpack.c.b16 %v2168, %v2167
        %v2193 = vpack.c.b16 %v2170, %v2169
        %v2194 = vpack.c.b16 %v2172, %v2171
        %v2195 = vpack.c.b16 %v2174, %v2173
        %v2196 = vpack.c.b16 %v2176, %v2175
        %v2197 = vpack.c.b16 %v2178, %v2177
        %v2198 = vpack.c.b16 %v2180, %v2179
        %v2199 = vpack.c.b16 %v2182, %v2181
        %v2200 = vpack.c.b16 %v2184, %v2183
        %v2202 = vsel %vm682, %v2152, 0
        %v2205 = vsel %vm682, %v2185, 0
        %v2208 = vsel %vm682, %v2186, 0
        %v2211 = vsel %vm682, %v2187, 0
        %v2214 = vsel %vm682, %v2188, 0
        %v2217 = vsel %vm682, %v2189, 0
        %v2220 = vsel %vm682, %v2190, 0
        %v2223 = vsel %vm682, %v2191, 0
        %v2226 = vsel %vm682, %v2192, 0
        %v2229 = vsel %vm682, %v2193, 0
        %v2232 = vsel %vm682, %v2194, 0
        %v2235 = vsel %vm682, %v2195, 0
        %v2238 = vsel %vm682, %v2196, 0
        %v2241 = vsel %vm682, %v2197, 0
        %v2244 = vsel %vm682, %v2198, 0
        %v2247 = vsel %vm682, %v2199, 0
        %v2250 = vsel %vm682, %v2200, 0
        %2252 = vmatprep.subr.bf16.mxu0 0
        %2253 = vmatpush1.bf16.xpose.msra.mxu0 %v2226
        %2254 = vmatprep.subr.bf16.mxu0 0
        %2255 = vmatpush1.bf16.xpose.msra.mxu0 %v2223
        %2256 = vmatprep.subr.bf16.mxu0 0
        %2257 = vmatpush1.bf16.xpose.msra.mxu0 %v2220
        %2258 = vmatprep.subr.bf16.mxu0 0
        %2259 = vmatpush1.bf16.xpose.msra.mxu0 %v2217
        %2260 = vmatprep.subr.bf16.mxu0 0
        %2261 = vmatpush1.bf16.xpose.msra.mxu0 %v2214
        %2262 = vmatprep.subr.bf16.mxu0 0
        %2263 = vmatpush1.bf16.xpose.msra.mxu0 %v2211
        %2264 = vmatprep.subr.bf16.mxu0 0
        %2265 = vmatpush1.bf16.xpose.msra.mxu0 %v2208
        %2266 = vmatprep.subr.bf16.mxu0 0
        %2267 = vmatpush1.bf16.xpose.msra.mxu0 %v2205
        %2268 = vmatprep.subr.bf16.mxu0 0
        %2269 = vmatpush2.bf16.xpose.msra.mxu0 %v2250
        %2270 = vmatprep.subr.bf16.mxu0 0
        %2271 = vmatpush2.bf16.xpose.msra.mxu0 %v2247
        %2272 = vmatprep.subr.bf16.mxu0 0
        %2273 = vmatpush2.bf16.xpose.msra.mxu0 %v2244
        %2274 = vmatprep.subr.bf16.mxu0 0
        %2275 = vmatpush2.bf16.xpose.msra.mxu0 %v2241
        %2276 = vmatprep.subr.bf16.mxu0 0
        %2277 = vmatpush2.bf16.xpose.msra.mxu0 %v2238
        %2278 = vmatprep.subr.bf16.mxu0 0
        %2279 = vmatpush2.bf16.xpose.msra.mxu0 %v2235
        %2280 = vmatprep.subr.bf16.mxu0 0
        %2281 = vmatpush2.bf16.xpose.msra.mxu0 %v2232
        %2282 = vmatprep.subr.bf16.mxu0 0
        %2283 = vmatpush2.bf16.xpose.msra.mxu0 %v2229
        %2284 = vmatprep.mubr.bf16.mxu0 0
        %2285 = vmatmul.mubr.bf16.gmra.mxu0 %v2202
        %v2286 = vpop.f32.mrf.mxu0
        %v2287 = vadd.f32 0.0, %v2286
        %v2288 = vpop.f32.mrf.mxu0
        %v2289 = vadd.f32 0.0, %v2288
        %v2290 = vpop.f32.mrf.mxu0
        %v2291 = vadd.f32 0.0, %v2290
        %v2292 = vpop.f32.mrf.mxu0
        %v2293 = vadd.f32 0.0, %v2292
        %2294 = vdwg.mxu0
        %v2295 = vadd.f32 %v2013, %v2287
        %v2296 = vadd.f32 %v2014, %v2289
        %v2297 = vadd.f32 %v2015, %v2291
        %v2298 = vadd.f32 %v2016, %v2293
        %s2299 = sadd.s32 %s185, 2
        %s2300 = smul.u32 %s2299, 3
        %s2301 = smul.addr %s2300, 4
        %s2302 = scalar_lea.vmem %s182, %s2301
        %v2303 = vld [vmem:[%s2302] sm:$0xf]
        %v2304 = vld [vmem:[%s2302 + $0x4] sm:$0xf]
        %v2305 = vld [vmem:[%s2302 + $0x8] sm:$0x1]
        %v2306 = vld [vmem:[%s2302 + $0xc] sm:$0xf]
        %v2307 = vld [vmem:[%s2302 + $0x10] sm:$0xf]
        %v2308 = vld [vmem:[%s2302 + $0x14] sm:$0x1]
        %v2309 = vld [vmem:[%s2302 + $0x18] sm:$0xf]
        %v2310 = vld [vmem:[%s2302 + $0x1c] sm:$0xf]
        %v2311 = vld [vmem:[%s2302 + $0x20] sm:$0x1]
        %v2312 = vld [vmem:[%s2302 + $0x24] sm:$0xf]
        %v2313 = vld [vmem:[%s2302 + $0x28] sm:$0xf]
        %v2314 = vld [vmem:[%s2302 + $0x2c] sm:$0x1]
        %v2315 = vld [vmem:[%s2302 + $0x30] sm:$0xf]
        %v2316 = vld [vmem:[%s2302 + $0x34] sm:$0xf]
        %v2317 = vld [vmem:[%s2302 + $0x38] sm:$0x1]
        %v2318 = vld [vmem:[%s2302 + $0x3c] sm:$0xf]
        %v2319 = vld [vmem:[%s2302 + $0x40] sm:$0xf]
        %v2320 = vld [vmem:[%s2302 + $0x44] sm:$0x1]
        %v2321 = vld [vmem:[%s2302 + $0x48] sm:$0xf]
        %v2322 = vld [vmem:[%s2302 + $0x4c] sm:$0xf]
        %v2323 = vld [vmem:[%s2302 + $0x50] sm:$0x1]
        %v2324 = vld [vmem:[%s2302 + $0x54] sm:$0xf]
        %v2325 = vld [vmem:[%s2302 + $0x58] sm:$0xf]
        %v2326 = vld [vmem:[%s2302 + $0x5c] sm:$0x1]
        %v2327 = vld [vmem:[%s2302 + $0x60] sm:$0xf]
        %v2328 = vld [vmem:[%s2302 + $0x64] sm:$0xf]
        %v2329 = vld [vmem:[%s2302 + $0x68] sm:$0x1]
        %v2330 = vld [vmem:[%s2302 + $0x6c] sm:$0xf]
        %v2331 = vld [vmem:[%s2302 + $0x70] sm:$0xf]
        %v2332 = vld [vmem:[%s2302 + $0x74] sm:$0x1]
        %v2333 = vld [vmem:[%s2302 + $0x78] sm:$0xf]
        %v2334 = vld [vmem:[%s2302 + $0x7c] sm:$0xf]
        %v2335 = vld [vmem:[%s2302 + $0x80] sm:$0x1]
        %v2336 = vld [vmem:[%s2302 + $0x84] sm:$0xf]
        %v2337 = vld [vmem:[%s2302 + $0x88] sm:$0xf]
        %v2338 = vld [vmem:[%s2302 + $0x8c] sm:$0x1]
        %v2339 = vld [vmem:[%s2302 + $0x90] sm:$0xf]
        %v2340 = vld [vmem:[%s2302 + $0x94] sm:$0xf]
        %v2341 = vld [vmem:[%s2302 + $0x98] sm:$0x1]
        %v2342 = vld [vmem:[%s2302 + $0x9c] sm:$0xf]
        %v2343 = vld [vmem:[%s2302 + $0xa0] sm:$0xf]
        %v2344 = vld [vmem:[%s2302 + $0xa4] sm:$0x1]
        %v2345 = vld [vmem:[%s2302 + $0xa8] sm:$0xf]
        %v2346 = vld [vmem:[%s2302 + $0xac] sm:$0xf]
        %v2347 = vld [vmem:[%s2302 + $0xb0] sm:$0x1]
        %v2348 = vld [vmem:[%s2302 + $0xb4] sm:$0xf]
        %v2349 = vld [vmem:[%s2302 + $0xb8] sm:$0xf]
        %v2350 = vld [vmem:[%s2302 + $0xbc] sm:$0x1]
        %s2351 = scalar_lea.vmem %s1, 48
        %v2352 = vld [vmem:[%s2351] sm:$0xf]
        %v2353 = vld [vmem:[%s2351 + $0x4] sm:$0xf]
        %v2356 = vunpack.c.l.b16 %v2352
        %v2357 = vunpack.c.l.b16 %v2353
        %v2358 = vpack.c.b16 %v2357, %v2356
        %v2391 = vunpack.c.l.b16 %v2303
        %v2392 = vunpack.c.l.b16 %v2304
        %v2393 = vunpack.c.l.b16 %v2306
        %v2394 = vunpack.c.l.b16 %v2307
        %v2395 = vunpack.c.l.b16 %v2309
        %v2396 = vunpack.c.l.b16 %v2310
        %v2397 = vunpack.c.l.b16 %v2312
        %v2398 = vunpack.c.l.b16 %v2313
        %v2399 = vunpack.c.l.b16 %v2315
        %v2400 = vunpack.c.l.b16 %v2316
        %v2401 = vunpack.c.l.b16 %v2318
        %v2402 = vunpack.c.l.b16 %v2319
        %v2403 = vunpack.c.l.b16 %v2321
        %v2404 = vunpack.c.l.b16 %v2322
        %v2405 = vunpack.c.l.b16 %v2324
        %v2406 = vunpack.c.l.b16 %v2325
        %v2407 = vunpack.c.l.b16 %v2327
        %v2408 = vunpack.c.l.b16 %v2328
        %v2409 = vunpack.c.l.b16 %v2330
        %v2410 = vunpack.c.l.b16 %v2331
        %v2411 = vunpack.c.l.b16 %v2333
        %v2412 = vunpack.c.l.b16 %v2334
        %v2413 = vunpack.c.l.b16 %v2336
        %v2414 = vunpack.c.l.b16 %v2337
        %v2415 = vunpack.c.l.b16 %v2339
        %v2416 = vunpack.c.l.b16 %v2340
        %v2417 = vunpack.c.l.b16 %v2342
        %v2418 = vunpack.c.l.b16 %v2343
        %v2419 = vunpack.c.l.b16 %v2345
        %v2420 = vunpack.c.l.b16 %v2346
        %v2421 = vunpack.c.l.b16 %v2348
        %v2422 = vunpack.c.l.b16 %v2349
        %v2423 = vpack.c.b16 %v2392, %v2391
        %v2424 = vpack.c.b16 %v2394, %v2393
        %v2425 = vpack.c.b16 %v2396, %v2395
        %v2426 = vpack.c.b16 %v2398, %v2397
        %v2427 = vpack.c.b16 %v2400, %v2399
        %v2428 = vpack.c.b16 %v2402, %v2401
        %v2429 = vpack.c.b16 %v2404, %v2403
        %v2430 = vpack.c.b16 %v2406, %v2405
        %v2431 = vpack.c.b16 %v2408, %v2407
        %v2432 = vpack.c.b16 %v2410, %v2409
        %v2433 = vpack.c.b16 %v2412, %v2411
        %v2434 = vpack.c.b16 %v2414, %v2413
        %v2435 = vpack.c.b16 %v2416, %v2415
        %v2436 = vpack.c.b16 %v2418, %v2417
        %v2437 = vpack.c.b16 %v2420, %v2419
        %v2438 = vpack.c.b16 %v2422, %v2421
        %v2440 = vsel %vm682, %v2358, 0
        %v2443 = vsel %vm682, %v2423, 0
        %v2446 = vsel %vm682, %v2424, 0
        %v2449 = vsel %vm682, %v2425, 0
        %v2452 = vsel %vm682, %v2426, 0
        %v2455 = vsel %vm682, %v2427, 0
        %v2458 = vsel %vm682, %v2428, 0
        %v2461 = vsel %vm682, %v2429, 0
        %v2464 = vsel %vm682, %v2430, 0
        %v2467 = vsel %vm682, %v2431, 0
        %v2470 = vsel %vm682, %v2432, 0
        %v2473 = vsel %vm682, %v2433, 0
        %v2476 = vsel %vm682, %v2434, 0
        %v2479 = vsel %vm682, %v2435, 0
        %v2482 = vsel %vm682, %v2436, 0
        %v2485 = vsel %vm682, %v2437, 0
        %v2488 = vsel %vm682, %v2438, 0
        %2490 = vmatprep.subr.bf16.mxu0 0
        %2491 = vmatpush1.bf16.xpose.msra.mxu0 %v2464
        %2492 = vmatprep.subr.bf16.mxu0 0
        %2493 = vmatpush1.bf16.xpose.msra.mxu0 %v2461
        %2494 = vmatprep.subr.bf16.mxu0 0
        %2495 = vmatpush1.bf16.xpose.msra.mxu0 %v2458
        %2496 = vmatprep.subr.bf16.mxu0 0
        %2497 = vmatpush1.bf16.xpose.msra.mxu0 %v2455
        %2498 = vmatprep.subr.bf16.mxu0 0
        %2499 = vmatpush1.bf16.xpose.msra.mxu0 %v2452
        %2500 = vmatprep.subr.bf16.mxu0 0
        %2501 = vmatpush1.bf16.xpose.msra.mxu0 %v2449
        %2502 = vmatprep.subr.bf16.mxu0 0
        %2503 = vmatpush1.bf16.xpose.msra.mxu0 %v2446
        %2504 = vmatprep.subr.bf16.mxu0 0
        %2505 = vmatpush1.bf16.xpose.msra.mxu0 %v2443
        %2506 = vmatprep.subr.bf16.mxu0 0
        %2507 = vmatpush2.bf16.xpose.msra.mxu0 %v2488
        %2508 = vmatprep.subr.bf16.mxu0 0
        %2509 = vmatpush2.bf16.xpose.msra.mxu0 %v2485
        %2510 = vmatprep.subr.bf16.mxu0 0
        %2511 = vmatpush2.bf16.xpose.msra.mxu0 %v2482
        %2512 = vmatprep.subr.bf16.mxu0 0
        %2513 = vmatpush2.bf16.xpose.msra.mxu0 %v2479
        %2514 = vmatprep.subr.bf16.mxu0 0
        %2515 = vmatpush2.bf16.xpose.msra.mxu0 %v2476
        %2516 = vmatprep.subr.bf16.mxu0 0
        %2517 = vmatpush2.bf16.xpose.msra.mxu0 %v2473
        %2518 = vmatprep.subr.bf16.mxu0 0
        %2519 = vmatpush2.bf16.xpose.msra.mxu0 %v2470
        %2520 = vmatprep.subr.bf16.mxu0 0
        %2521 = vmatpush2.bf16.xpose.msra.mxu0 %v2467
        %2522 = vmatprep.mubr.bf16.mxu0 0
        %2523 = vmatmul.mubr.bf16.gmra.mxu0 %v2440
        %v2524 = vpop.f32.mrf.mxu0
        %v2525 = vadd.f32 0.0, %v2524
        %v2526 = vpop.f32.mrf.mxu0
        %v2527 = vadd.f32 0.0, %v2526
        %v2528 = vpop.f32.mrf.mxu0
        %v2529 = vadd.f32 0.0, %v2528
        %v2530 = vpop.f32.mrf.mxu0
        %v2531 = vadd.f32 0.0, %v2530
        %2532 = vdwg.mxu0
        %v2533 = vadd.f32 %v2295, %v2525
        %v2534 = vadd.f32 %v2296, %v2527
        %v2535 = vadd.f32 %v2297, %v2529
        %v2536 = vadd.f32 %v2298, %v2531
        %v2538 = vshrl.u32 %v2303, 16
        %v2540 = vrot.slane %v2538, 4
        %v2541 = vshll.u32 %v2303, 16
        %v2543 = vrot.slane %v2541, 5
        %v2544 = vor.u32 %v2540, %v2543
        %v2545 = vrot.slane %v2544, 4
        %v2547 = vshll.u32 %v2304, 16
        %v2549 = vrot.slane %v2547, 5
        %v2550 = vsel %vm241, %v2545, %v2549
        %v2551 = vshrl.u32 %v2304, 16
        %v2553 = vrot.slane %v2551, 4
        %v2554 = vor.u32 %v2553, %v2549
        %v2555 = vrot.slane %v2554, 4
        %v2557 = vshll.u32 %v2305, 16
        %v2559 = vrot.slane %v2557, 5
        %v2560 = vsel %vm241, %v2555, %v2559
        %v2562 = vshrl.u32 %v2306, 16
        %v2564 = vrot.slane %v2562, 4
        %v2565 = vshll.u32 %v2306, 16
        %v2567 = vrot.slane %v2565, 5
        %v2568 = vor.u32 %v2564, %v2567
        %v2569 = vrot.slane %v2568, 4
        %v2571 = vshll.u32 %v2307, 16
        %v2573 = vrot.slane %v2571, 5
        %v2574 = vsel %vm241, %v2569, %v2573
        %v2575 = vshrl.u32 %v2307, 16
        %v2577 = vrot.slane %v2575, 4
        %v2578 = vor.u32 %v2577, %v2573
        %v2579 = vrot.slane %v2578, 4
        %v2581 = vshll.u32 %v2308, 16
        %v2583 = vrot.slane %v2581, 5
        %v2584 = vsel %vm241, %v2579, %v2583
        %v2586 = vshrl.u32 %v2309, 16
        %v2588 = vrot.slane %v2586, 4
        %v2589 = vshll.u32 %v2309, 16
        %v2591 = vrot.slane %v2589, 5
        %v2592 = vor.u32 %v2588, %v2591
        %v2593 = vrot.slane %v2592, 4
        %v2595 = vshll.u32 %v2310, 16
        %v2597 = vrot.slane %v2595, 5
        %v2598 = vsel %vm241, %v2593, %v2597
        %v2599 = vshrl.u32 %v2310, 16
        %v2601 = vrot.slane %v2599, 4
        %v2602 = vor.u32 %v2601, %v2597
        %v2603 = vrot.slane %v2602, 4
        %v2605 = vshll.u32 %v2311, 16
        %v2607 = vrot.slane %v2605, 5
        %v2608 = vsel %vm241, %v2603, %v2607
        %v2610 = vshrl.u32 %v2312, 16
        %v2612 = vrot.slane %v2610, 4
        %v2613 = vshll.u32 %v2312, 16
        %v2615 = vrot.slane %v2613, 5
        %v2616 = vor.u32 %v2612, %v2615
        %v2617 = vrot.slane %v2616, 4
        %v2619 = vshll.u32 %v2313, 16
        %v2621 = vrot.slane %v2619, 5
        %v2622 = vsel %vm241, %v2617, %v2621
        %v2623 = vshrl.u32 %v2313, 16
        %v2625 = vrot.slane %v2623, 4
        %v2626 = vor.u32 %v2625, %v2621
        %v2627 = vrot.slane %v2626, 4
        %v2629 = vshll.u32 %v2314, 16
        %v2631 = vrot.slane %v2629, 5
        %v2632 = vsel %vm241, %v2627, %v2631
        %v2634 = vshrl.u32 %v2315, 16
        %v2636 = vrot.slane %v2634, 4
        %v2637 = vshll.u32 %v2315, 16
        %v2639 = vrot.slane %v2637, 5
        %v2640 = vor.u32 %v2636, %v2639
        %v2641 = vrot.slane %v2640, 4
        %v2643 = vshll.u32 %v2316, 16
        %v2645 = vrot.slane %v2643, 5
        %v2646 = vsel %vm241, %v2641, %v2645
        %v2647 = vshrl.u32 %v2316, 16
        %v2649 = vrot.slane %v2647, 4
        %v2650 = vor.u32 %v2649, %v2645
        %v2651 = vrot.slane %v2650, 4
        %v2653 = vshll.u32 %v2317, 16
        %v2655 = vrot.slane %v2653, 5
        %v2656 = vsel %vm241, %v2651, %v2655
        %v2658 = vshrl.u32 %v2318, 16
        %v2660 = vrot.slane %v2658, 4
        %v2661 = vshll.u32 %v2318, 16
        %v2663 = vrot.slane %v2661, 5
        %v2664 = vor.u32 %v2660, %v2663
        %v2665 = vrot.slane %v2664, 4
        %v2667 = vshll.u32 %v2319, 16
        %v2669 = vrot.slane %v2667, 5
        %v2670 = vsel %vm241, %v2665, %v2669
        %v2671 = vshrl.u32 %v2319, 16
        %v2673 = vrot.slane %v2671, 4
        %v2674 = vor.u32 %v2673, %v2669
        %v2675 = vrot.slane %v2674, 4
        %v2677 = vshll.u32 %v2320, 16
        %v2679 = vrot.slane %v2677, 5
        %v2680 = vsel %vm241, %v2675, %v2679
        %v2682 = vshrl.u32 %v2321, 16
        %v2684 = vrot.slane %v2682, 4
        %v2685 = vshll.u32 %v2321, 16
        %v2687 = vrot.slane %v2685, 5
        %v2688 = vor.u32 %v2684, %v2687
        %v2689 = vrot.slane %v2688, 4
        %v2691 = vshll.u32 %v2322, 16
        %v2693 = vrot.slane %v2691, 5
        %v2694 = vsel %vm241, %v2689, %v2693
        %v2695 = vshrl.u32 %v2322, 16
        %v2697 = vrot.slane %v2695, 4
        %v2698 = vor.u32 %v2697, %v2693
        %v2699 = vrot.slane %v2698, 4
        %v2701 = vshll.u32 %v2323, 16
        %v2703 = vrot.slane %v2701, 5
        %v2704 = vsel %vm241, %v2699, %v2703
        %v2706 = vshrl.u32 %v2324, 16
        %v2708 = vrot.slane %v2706, 4
        %v2709 = vshll.u32 %v2324, 16
        %v2711 = vrot.slane %v2709, 5
        %v2712 = vor.u32 %v2708, %v2711
        %v2713 = vrot.slane %v2712, 4
        %v2715 = vshll.u32 %v2325, 16
        %v2717 = vrot.slane %v2715, 5
        %v2718 = vsel %vm241, %v2713, %v2717
        %v2719 = vshrl.u32 %v2325, 16
        %v2721 = vrot.slane %v2719, 4
        %v2722 = vor.u32 %v2721, %v2717
        %v2723 = vrot.slane %v2722, 4
        %v2725 = vshll.u32 %v2326, 16
        %v2727 = vrot.slane %v2725, 5
        %v2728 = vsel %vm241, %v2723, %v2727
        %v2730 = vshrl.u32 %v2327, 16
        %v2732 = vrot.slane %v2730, 4
        %v2733 = vshll.u32 %v2327, 16
        %v2735 = vrot.slane %v2733, 5
        %v2736 = vor.u32 %v2732, %v2735
        %v2737 = vrot.slane %v2736, 4
        %v2739 = vshll.u32 %v2328, 16
        %v2741 = vrot.slane %v2739, 5
        %v2742 = vsel %vm241, %v2737, %v2741
        %v2743 = vshrl.u32 %v2328, 16
        %v2745 = vrot.slane %v2743, 4
        %v2746 = vor.u32 %v2745, %v2741
        %v2747 = vrot.slane %v2746, 4
        %v2749 = vshll.u32 %v2329, 16
        %v2751 = vrot.slane %v2749, 5
        %v2752 = vsel %vm241, %v2747, %v2751
        %v2754 = vshrl.u32 %v2330, 16
        %v2756 = vrot.slane %v2754, 4
        %v2757 = vshll.u32 %v2330, 16
        %v2759 = vrot.slane %v2757, 5
        %v2760 = vor.u32 %v2756, %v2759
        %v2761 = vrot.slane %v2760, 4
        %v2763 = vshll.u32 %v2331, 16
        %v2765 = vrot.slane %v2763, 5
        %v2766 = vsel %vm241, %v2761, %v2765
        %v2767 = vshrl.u32 %v2331, 16
        %v2769 = vrot.slane %v2767, 4
        %v2770 = vor.u32 %v2769, %v2765
        %v2771 = vrot.slane %v2770, 4
        %v2773 = vshll.u32 %v2332, 16
        %v2775 = vrot.slane %v2773, 5
        %v2776 = vsel %vm241, %v2771, %v2775
        %v2778 = vshrl.u32 %v2333, 16
        %v2780 = vrot.slane %v2778, 4
        %v2781 = vshll.u32 %v2333, 16
        %v2783 = vrot.slane %v2781, 5
        %v2784 = vor.u32 %v2780, %v2783
        %v2785 = vrot.slane %v2784, 4
        %v2787 = vshll.u32 %v2334, 16
        %v2789 = vrot.slane %v2787, 5
        %v2790 = vsel %vm241, %v2785, %v2789
        %v2791 = vshrl.u32 %v2334, 16
        %v2793 = vrot.slane %v2791, 4
        %v2794 = vor.u32 %v2793, %v2789
        %v2795 = vrot.slane %v2794, 4
        %v2797 = vshll.u32 %v2335, 16
        %v2799 = vrot.slane %v2797, 5
        %v2800 = vsel %vm241, %v2795, %v2799
        %v2802 = vshrl.u32 %v2336, 16
        %v2804 = vrot.slane %v2802, 4
        %v2805 = vshll.u32 %v2336, 16
        %v2807 = vrot.slane %v2805, 5
        %v2808 = vor.u32 %v2804, %v2807
        %v2809 = vrot.slane %v2808, 4
        %v2811 = vshll.u32 %v2337, 16
        %v2813 = vrot.slane %v2811, 5
        %v2814 = vsel %vm241, %v2809, %v2813
        %v2815 = vshrl.u32 %v2337, 16
        %v2817 = vrot.slane %v2815, 4
        %v2818 = vor.u32 %v2817, %v2813
        %v2819 = vrot.slane %v2818, 4
        %v2821 = vshll.u32 %v2338, 16
        %v2823 = vrot.slane %v2821, 5
        %v2824 = vsel %vm241, %v2819, %v2823
        %v2826 = vshrl.u32 %v2339, 16
        %v2828 = vrot.slane %v2826, 4
        %v2829 = vshll.u32 %v2339, 16
        %v2831 = vrot.slane %v2829, 5
        %v2832 = vor.u32 %v2828, %v2831
        %v2833 = vrot.slane %v2832, 4
        %v2835 = vshll.u32 %v2340, 16
        %v2837 = vrot.slane %v2835, 5
        %v2838 = vsel %vm241, %v2833, %v2837
        %v2839 = vshrl.u32 %v2340, 16
        %v2841 = vrot.slane %v2839, 4
        %v2842 = vor.u32 %v2841, %v2837
        %v2843 = vrot.slane %v2842, 4
        %v2845 = vshll.u32 %v2341, 16
        %v2847 = vrot.slane %v2845, 5
        %v2848 = vsel %vm241, %v2843, %v2847
        %v2850 = vshrl.u32 %v2342, 16
        %v2852 = vrot.slane %v2850, 4
        %v2853 = vshll.u32 %v2342, 16
        %v2855 = vrot.slane %v2853, 5
        %v2856 = vor.u32 %v2852, %v2855
        %v2857 = vrot.slane %v2856, 4
        %v2859 = vshll.u32 %v2343, 16
        %v2861 = vrot.slane %v2859, 5
        %v2862 = vsel %vm241, %v2857, %v2861
        %v2863 = vshrl.u32 %v2343, 16
        %v2865 = vrot.slane %v2863, 4
        %v2866 = vor.u32 %v2865, %v2861
        %v2867 = vrot.slane %v2866, 4
        %v2869 = vshll.u32 %v2344, 16
        %v2871 = vrot.slane %v2869, 5
        %v2872 = vsel %vm241, %v2867, %v2871
        %v2874 = vshrl.u32 %v2345, 16
        %v2876 = vrot.slane %v2874, 4
        %v2877 = vshll.u32 %v2345, 16
        %v2879 = vrot.slane %v2877, 5
        %v2880 = vor.u32 %v2876, %v2879
        %v2881 = vrot.slane %v2880, 4
        %v2883 = vshll.u32 %v2346, 16
        %v2885 = vrot.slane %v2883, 5
        %v2886 = vsel %vm241, %v2881, %v2885
        %v2887 = vshrl.u32 %v2346, 16
        %v2889 = vrot.slane %v2887, 4
        %v2890 = vor.u32 %v2889, %v2885
        %v2891 = vrot.slane %v2890, 4
        %v2893 = vshll.u32 %v2347, 16
        %v2895 = vrot.slane %v2893, 5
        %v2896 = vsel %vm241, %v2891, %v2895
        %v2898 = vshrl.u32 %v2348, 16
        %v2900 = vrot.slane %v2898, 4
        %v2901 = vshll.u32 %v2348, 16
        %v2903 = vrot.slane %v2901, 5
        %v2904 = vor.u32 %v2900, %v2903
        %v2905 = vrot.slane %v2904, 4
        %v2907 = vshll.u32 %v2349, 16
        %v2909 = vrot.slane %v2907, 5
        %v2910 = vsel %vm241, %v2905, %v2909
        %v2911 = vshrl.u32 %v2349, 16
        %v2913 = vrot.slane %v2911, 4
        %v2914 = vor.u32 %v2913, %v2909
        %v2915 = vrot.slane %v2914, 4
        %v2917 = vshll.u32 %v2350, 16
        %v2919 = vrot.slane %v2917, 5
        %v2920 = vsel %vm241, %v2915, %v2919
        %s2921 = scalar_lea.vmem %s1, 56
        %v2922 = vld [vmem:[%s2921] sm:$0xf]
        %v2923 = vld [vmem:[%s2921 + $0x4] sm:$0xf]
        %v2926 = vunpack.c.l.b16 %v2922
        %v2927 = vunpack.c.l.b16 %v2923
        %v2928 = vpack.c.b16 %v2927, %v2926
        %v2929 = vunpack.c.l.b16 %v2550
        %v2930 = vunpack.c.l.b16 %v2560
        %v2931 = vunpack.c.l.b16 %v2574
        %v2932 = vunpack.c.l.b16 %v2584
        %v2933 = vunpack.c.l.b16 %v2598
        %v2934 = vunpack.c.l.b16 %v2608
        %v2935 = vunpack.c.l.b16 %v2622
        %v2936 = vunpack.c.l.b16 %v2632
        %v2937 = vunpack.c.l.b16 %v2646
        %v2938 = vunpack.c.l.b16 %v2656
        %v2939 = vunpack.c.l.b16 %v2670
        %v2940 = vunpack.c.l.b16 %v2680
        %v2941 = vunpack.c.l.b16 %v2694
        %v2942 = vunpack.c.l.b16 %v2704
        %v2943 = vunpack.c.l.b16 %v2718
        %v2944 = vunpack.c.l.b16 %v2728
        %v2945 = vunpack.c.l.b16 %v2742
        %v2946 = vunpack.c.l.b16 %v2752
        %v2947 = vunpack.c.l.b16 %v2766
        %v2948 = vunpack.c.l.b16 %v2776
        %v2949 = vunpack.c.l.b16 %v2790
        %v2950 = vunpack.c.l.b16 %v2800
        %v2951 = vunpack.c.l.b16 %v2814
        %v2952 = vunpack.c.l.b16 %v2824
        %v2953 = vunpack.c.l.b16 %v2838
        %v2954 = vunpack.c.l.b16 %v2848
        %v2955 = vunpack.c.l.b16 %v2862
        %v2956 = vunpack.c.l.b16 %v2872
        %v2957 = vunpack.c.l.b16 %v2886
        %v2958 = vunpack.c.l.b16 %v2896
        %v2959 = vunpack.c.l.b16 %v2910
        %v2960 = vunpack.c.l.b16 %v2920
        %v2961 = vpack.c.b16 %v2930, %v2929
        %v2962 = vpack.c.b16 %v2932, %v2931
        %v2963 = vpack.c.b16 %v2934, %v2933
        %v2964 = vpack.c.b16 %v2936, %v2935
        %v2965 = vpack.c.b16 %v2938, %v2937
        %v2966 = vpack.c.b16 %v2940, %v2939
        %v2967 = vpack.c.b16 %v2942, %v2941
        %v2968 = vpack.c.b16 %v2944, %v2943
        %v2969 = vpack.c.b16 %v2946, %v2945
        %v2970 = vpack.c.b16 %v2948, %v2947
        %v2971 = vpack.c.b16 %v2950, %v2949
        %v2972 = vpack.c.b16 %v2952, %v2951
        %v2973 = vpack.c.b16 %v2954, %v2953
        %v2974 = vpack.c.b16 %v2956, %v2955
        %v2975 = vpack.c.b16 %v2958, %v2957
        %v2976 = vpack.c.b16 %v2960, %v2959
        %v2978 = vsel %vm682, %v2928, 0
        %v2981 = vsel %vm682, %v2961, 0
        %v2984 = vsel %vm682, %v2962, 0
        %v2987 = vsel %vm682, %v2963, 0
        %v2990 = vsel %vm682, %v2964, 0
        %v2993 = vsel %vm682, %v2965, 0
        %v2996 = vsel %vm682, %v2966, 0
        %v2999 = vsel %vm682, %v2967, 0
        %v3002 = vsel %vm682, %v2968, 0
        %v3005 = vsel %vm682, %v2969, 0
        %v3008 = vsel %vm682, %v2970, 0
        %v3011 = vsel %vm682, %v2971, 0
        %v3014 = vsel %vm682, %v2972, 0
        %v3017 = vsel %vm682, %v2973, 0
        %v3020 = vsel %vm682, %v2974, 0
        %v3023 = vsel %vm682, %v2975, 0
        %v3026 = vsel %vm682, %v2976, 0
        %3028 = vmatprep.subr.bf16.mxu0 0
        %3029 = vmatpush1.bf16.xpose.msra.mxu0 %v3002
        %3030 = vmatprep.subr.bf16.mxu0 0
        %3031 = vmatpush1.bf16.xpose.msra.mxu0 %v2999
        %3032 = vmatprep.subr.bf16.mxu0 0
        %3033 = vmatpush1.bf16.xpose.msra.mxu0 %v2996
        %3034 = vmatprep.subr.bf16.mxu0 0
        %3035 = vmatpush1.bf16.xpose.msra.mxu0 %v2993
        %3036 = vmatprep.subr.bf16.mxu0 0
        %3037 = vmatpush1.bf16.xpose.msra.mxu0 %v2990
        %3038 = vmatprep.subr.bf16.mxu0 0
        %3039 = vmatpush1.bf16.xpose.msra.mxu0 %v2987
        %3040 = vmatprep.subr.bf16.mxu0 0
        %3041 = vmatpush1.bf16.xpose.msra.mxu0 %v2984
        %3042 = vmatprep.subr.bf16.mxu0 0
        %3043 = vmatpush1.bf16.xpose.msra.mxu0 %v2981
        %3044 = vmatprep.subr.bf16.mxu0 0
        %3045 = vmatpush2.bf16.xpose.msra.mxu0 %v3026
        %3046 = vmatprep.subr.bf16.mxu0 0
        %3047 = vmatpush2.bf16.xpose.msra.mxu0 %v3023
        %3048 = vmatprep.subr.bf16.mxu0 0
        %3049 = vmatpush2.bf16.xpose.msra.mxu0 %v3020
        %3050 = vmatprep.subr.bf16.mxu0 0
        %3051 = vmatpush2.bf16.xpose.msra.mxu0 %v3017
        %3052 = vmatprep.subr.bf16.mxu0 0
        %3053 = vmatpush2.bf16.xpose.msra.mxu0 %v3014
        %3054 = vmatprep.subr.bf16.mxu0 0
        %3055 = vmatpush2.bf16.xpose.msra.mxu0 %v3011
        %3056 = vmatprep.subr.bf16.mxu0 0
        %3057 = vmatpush2.bf16.xpose.msra.mxu0 %v3008
        %3058 = vmatprep.subr.bf16.mxu0 0
        %3059 = vmatpush2.bf16.xpose.msra.mxu0 %v3005
        %3060 = vmatprep.mubr.bf16.mxu0 0
        %3061 = vmatmul.mubr.bf16.gmra.mxu0 %v2978
        %v3062 = vpop.f32.mrf.mxu0
        %v3063 = vadd.f32 0.0, %v3062
        %v3064 = vpop.f32.mrf.mxu0
        %v3065 = vadd.f32 0.0, %v3064
        %v3066 = vpop.f32.mrf.mxu0
        %v3067 = vadd.f32 0.0, %v3066
        %v3068 = vpop.f32.mrf.mxu0
        %v3069 = vadd.f32 0.0, %v3068
        %3070 = vdwg.mxu0
        %v3071 = vadd.f32 %v2533, %v3063
        %v3072 = vadd.f32 %v2534, %v3065
        %v3073 = vadd.f32 %v2535, %v3067
        %v3074 = vadd.f32 %v2536, %v3069
        %v3091 = vrot.slane %v2303, 5
        %v3092 = vrot.slane %v3091, 4
        %v3093 = vrot.slane %v2304, 5
        %v3094 = vsel %vm974, %v3092, %v3093
        %v3095 = vrot.slane %v3093, 4
        %v3096 = vrot.slane %v2305, 5
        %v3097 = vsel %vm974, %v3095, %v3096
        %v3098 = vrot.slane %v2306, 5
        %v3099 = vrot.slane %v3098, 4
        %v3100 = vrot.slane %v2307, 5
        %v3101 = vsel %vm974, %v3099, %v3100
        %v3102 = vrot.slane %v3100, 4
        %v3103 = vrot.slane %v2308, 5
        %v3104 = vsel %vm974, %v3102, %v3103
        %v3105 = vrot.slane %v2309, 5
        %v3106 = vrot.slane %v3105, 4
        %v3107 = vrot.slane %v2310, 5
        %v3108 = vsel %vm974, %v3106, %v3107
        %v3109 = vrot.slane %v3107, 4
        %v3110 = vrot.slane %v2311, 5
        %v3111 = vsel %vm974, %v3109, %v3110
        %v3112 = vrot.slane %v2312, 5
        %v3113 = vrot.slane %v3112, 4
        %v3114 = vrot.slane %v2313, 5
        %v3115 = vsel %vm974, %v3113, %v3114
        %v3116 = vrot.slane %v3114, 4
        %v3117 = vrot.slane %v2314, 5
        %v3118 = vsel %vm974, %v3116, %v3117
        %v3119 = vrot.slane %v2315, 5
        %v3120 = vrot.slane %v3119, 4
        %v3121 = vrot.slane %v2316, 5
        %v3122 = vsel %vm974, %v3120, %v3121
        %v3123 = vrot.slane %v3121, 4
        %v3124 = vrot.slane %v2317, 5
        %v3125 = vsel %vm974, %v3123, %v3124
        %v3126 = vrot.slane %v2318, 5
        %v3127 = vrot.slane %v3126, 4
        %v3128 = vrot.slane %v2319, 5
        %v3129 = vsel %vm974, %v3127, %v3128
        %v3130 = vrot.slane %v3128, 4
        %v3131 = vrot.slane %v2320, 5
        %v3132 = vsel %vm974, %v3130, %v3131
        %v3133 = vrot.slane %v2321, 5
        %v3134 = vrot.slane %v3133, 4
        %v3135 = vrot.slane %v2322, 5
        %v3136 = vsel %vm974, %v3134, %v3135
        %v3137 = vrot.slane %v3135, 4
        %v3138 = vrot.slane %v2323, 5
        %v3139 = vsel %vm974, %v3137, %v3138
        %v3140 = vrot.slane %v2324, 5
        %v3141 = vrot.slane %v3140, 4
        %v3142 = vrot.slane %v2325, 5
        %v3143 = vsel %vm974, %v3141, %v3142
        %v3144 = vrot.slane %v3142, 4
        %v3145 = vrot.slane %v2326, 5
        %v3146 = vsel %vm974, %v3144, %v3145
        %v3147 = vrot.slane %v2327, 5
        %v3148 = vrot.slane %v3147, 4
        %v3149 = vrot.slane %v2328, 5
        %v3150 = vsel %vm974, %v3148, %v3149
        %v3151 = vrot.slane %v3149, 4
        %v3152 = vrot.slane %v2329, 5
        %v3153 = vsel %vm974, %v3151, %v3152
        %v3154 = vrot.slane %v2330, 5
        %v3155 = vrot.slane %v3154, 4
        %v3156 = vrot.slane %v2331, 5
        %v3157 = vsel %vm974, %v3155, %v3156
        %v3158 = vrot.slane %v3156, 4
        %v3159 = vrot.slane %v2332, 5
        %v3160 = vsel %vm974, %v3158, %v3159
        %v3161 = vrot.slane %v2333, 5
        %v3162 = vrot.slane %v3161, 4
        %v3163 = vrot.slane %v2334, 5
        %v3164 = vsel %vm974, %v3162, %v3163
        %v3165 = vrot.slane %v3163, 4
        %v3166 = vrot.slane %v2335, 5
        %v3167 = vsel %vm974, %v3165, %v3166
        %v3168 = vrot.slane %v2336, 5
        %v3169 = vrot.slane %v3168, 4
        %v3170 = vrot.slane %v2337, 5
        %v3171 = vsel %vm974, %v3169, %v3170
        %v3172 = vrot.slane %v3170, 4
        %v3173 = vrot.slane %v2338, 5
        %v3174 = vsel %vm974, %v3172, %v3173
        %v3175 = vrot.slane %v2339, 5
        %v3176 = vrot.slane %v3175, 4
        %v3177 = vrot.slane %v2340, 5
        %v3178 = vsel %vm974, %v3176, %v3177
        %v3179 = vrot.slane %v3177, 4
        %v3180 = vrot.slane %v2341, 5
        %v3181 = vsel %vm974, %v3179, %v3180
        %v3182 = vrot.slane %v2342, 5
        %v3183 = vrot.slane %v3182, 4
        %v3184 = vrot.slane %v2343, 5
        %v3185 = vsel %vm974, %v3183, %v3184
        %v3186 = vrot.slane %v3184, 4
        %v3187 = vrot.slane %v2344, 5
        %v3188 = vsel %vm974, %v3186, %v3187
        %v3189 = vrot.slane %v2345, 5
        %v3190 = vrot.slane %v3189, 4
        %v3191 = vrot.slane %v2346, 5
        %v3192 = vsel %vm974, %v3190, %v3191
        %v3193 = vrot.slane %v3191, 4
        %v3194 = vrot.slane %v2347, 5
        %v3195 = vsel %vm974, %v3193, %v3194
        %v3196 = vrot.slane %v2348, 5
        %v3197 = vrot.slane %v3196, 4
        %v3198 = vrot.slane %v2349, 5
        %v3199 = vsel %vm974, %v3197, %v3198
        %v3200 = vrot.slane %v3198, 4
        %v3201 = vrot.slane %v2350, 5
        %v3202 = vsel %vm974, %v3200, %v3201
        %s3203 = scalar_lea.vmem %s1, 64
        %v3204 = vld [vmem:[%s3203] sm:$0xf]
        %v3205 = vld [vmem:[%s3203 + $0x4] sm:$0xf]
        %v3208 = vunpack.c.l.b16 %v3204
        %v3209 = vunpack.c.l.b16 %v3205
        %v3210 = vpack.c.b16 %v3209, %v3208
        %v3211 = vunpack.c.l.b16 %v3094
        %v3212 = vunpack.c.l.b16 %v3097
        %v3213 = vunpack.c.l.b16 %v3101
        %v3214 = vunpack.c.l.b16 %v3104
        %v3215 = vunpack.c.l.b16 %v3108
        %v3216 = vunpack.c.l.b16 %v3111
        %v3217 = vunpack.c.l.b16 %v3115
        %v3218 = vunpack.c.l.b16 %v3118
        %v3219 = vunpack.c.l.b16 %v3122
        %v3220 = vunpack.c.l.b16 %v3125
        %v3221 = vunpack.c.l.b16 %v3129
        %v3222 = vunpack.c.l.b16 %v3132
        %v3223 = vunpack.c.l.b16 %v3136
        %v3224 = vunpack.c.l.b16 %v3139
        %v3225 = vunpack.c.l.b16 %v3143
        %v3226 = vunpack.c.l.b16 %v3146
        %v3227 = vunpack.c.l.b16 %v3150
        %v3228 = vunpack.c.l.b16 %v3153
        %v3229 = vunpack.c.l.b16 %v3157
        %v3230 = vunpack.c.l.b16 %v3160
        %v3231 = vunpack.c.l.b16 %v3164
        %v3232 = vunpack.c.l.b16 %v3167
        %v3233 = vunpack.c.l.b16 %v3171
        %v3234 = vunpack.c.l.b16 %v3174
        %v3235 = vunpack.c.l.b16 %v3178
        %v3236 = vunpack.c.l.b16 %v3181
        %v3237 = vunpack.c.l.b16 %v3185
        %v3238 = vunpack.c.l.b16 %v3188
        %v3239 = vunpack.c.l.b16 %v3192
        %v3240 = vunpack.c.l.b16 %v3195
        %v3241 = vunpack.c.l.b16 %v3199
        %v3242 = vunpack.c.l.b16 %v3202
        %v3243 = vpack.c.b16 %v3212, %v3211
        %v3244 = vpack.c.b16 %v3214, %v3213
        %v3245 = vpack.c.b16 %v3216, %v3215
        %v3246 = vpack.c.b16 %v3218, %v3217
        %v3247 = vpack.c.b16 %v3220, %v3219
        %v3248 = vpack.c.b16 %v3222, %v3221
        %v3249 = vpack.c.b16 %v3224, %v3223
        %v3250 = vpack.c.b16 %v3226, %v3225
        %v3251 = vpack.c.b16 %v3228, %v3227
        %v3252 = vpack.c.b16 %v3230, %v3229
        %v3253 = vpack.c.b16 %v3232, %v3231
        %v3254 = vpack.c.b16 %v3234, %v3233
        %v3255 = vpack.c.b16 %v3236, %v3235
        %v3256 = vpack.c.b16 %v3238, %v3237
        %v3257 = vpack.c.b16 %v3240, %v3239
        %v3258 = vpack.c.b16 %v3242, %v3241
        %v3260 = vsel %vm682, %v3210, 0
        %v3263 = vsel %vm682, %v3243, 0
        %v3266 = vsel %vm682, %v3244, 0
        %v3269 = vsel %vm682, %v3245, 0
        %v3272 = vsel %vm682, %v3246, 0
        %v3275 = vsel %vm682, %v3247, 0
        %v3278 = vsel %vm682, %v3248, 0
        %v3281 = vsel %vm682, %v3249, 0
        %v3284 = vsel %vm682, %v3250, 0
        %v3287 = vsel %vm682, %v3251, 0
        %v3290 = vsel %vm682, %v3252, 0
        %v3293 = vsel %vm682, %v3253, 0
        %v3296 = vsel %vm682, %v3254, 0
        %v3299 = vsel %vm682, %v3255, 0
        %v3302 = vsel %vm682, %v3256, 0
        %v3305 = vsel %vm682, %v3257, 0
        %v3308 = vsel %vm682, %v3258, 0
        %3310 = vmatprep.subr.bf16.mxu0 0
        %3311 = vmatpush1.bf16.xpose.msra.mxu0 %v3284
        %3312 = vmatprep.subr.bf16.mxu0 0
        %3313 = vmatpush1.bf16.xpose.msra.mxu0 %v3281
        %3314 = vmatprep.subr.bf16.mxu0 0
        %3315 = vmatpush1.bf16.xpose.msra.mxu0 %v3278
        %3316 = vmatprep.subr.bf16.mxu0 0
        %3317 = vmatpush1.bf16.xpose.msra.mxu0 %v3275
        %3318 = vmatprep.subr.bf16.mxu0 0
        %3319 = vmatpush1.bf16.xpose.msra.mxu0 %v3272
        %3320 = vmatprep.subr.bf16.mxu0 0
        %3321 = vmatpush1.bf16.xpose.msra.mxu0 %v3269
        %3322 = vmatprep.subr.bf16.mxu0 0
        %3323 = vmatpush1.bf16.xpose.msra.mxu0 %v3266
        %3324 = vmatprep.subr.bf16.mxu0 0
        %3325 = vmatpush1.bf16.xpose.msra.mxu0 %v3263
        %3326 = vmatprep.subr.bf16.mxu0 0
        %3327 = vmatpush2.bf16.xpose.msra.mxu0 %v3308
        %3328 = vmatprep.subr.bf16.mxu0 0
        %3329 = vmatpush2.bf16.xpose.msra.mxu0 %v3305
        %3330 = vmatprep.subr.bf16.mxu0 0
        %3331 = vmatpush2.bf16.xpose.msra.mxu0 %v3302
        %3332 = vmatprep.subr.bf16.mxu0 0
        %3333 = vmatpush2.bf16.xpose.msra.mxu0 %v3299
        %3334 = vmatprep.subr.bf16.mxu0 0
        %3335 = vmatpush2.bf16.xpose.msra.mxu0 %v3296
        %3336 = vmatprep.subr.bf16.mxu0 0
        %3337 = vmatpush2.bf16.xpose.msra.mxu0 %v3293
        %3338 = vmatprep.subr.bf16.mxu0 0
        %3339 = vmatpush2.bf16.xpose.msra.mxu0 %v3290
        %3340 = vmatprep.subr.bf16.mxu0 0
        %3341 = vmatpush2.bf16.xpose.msra.mxu0 %v3287
        %3342 = vmatprep.mubr.bf16.mxu0 0
        %3343 = vmatmul.mubr.bf16.gmra.mxu0 %v3260
        %v3344 = vpop.f32.mrf.mxu0
        %v3345 = vadd.f32 0.0, %v3344
        %v3346 = vpop.f32.mrf.mxu0
        %v3347 = vadd.f32 0.0, %v3346
        %v3348 = vpop.f32.mrf.mxu0
        %v3349 = vadd.f32 0.0, %v3348
        %v3350 = vpop.f32.mrf.mxu0
        %v3351 = vadd.f32 0.0, %v3350
        %3352 = vdwg.mxu0
        %v3353 = vadd.f32 %v3071, %v3345
        %v3354 = vadd.f32 %v3072, %v3347
        %v3355 = vadd.f32 %v3073, %v3349
        %v3356 = vadd.f32 %v3074, %v3351
        %v3357 = vld [vmem:[%s2] sm:$0xff]
        %v3358 = vld [vmem:[%s2 + $0x8] sm:$0xff]
        %3360 = vset.pattern.permute.xlu0 0
        %3361 = vperm.xlu0 %3360, %v3357
        %v3362 = vpop.permute.xlu0 %3361
        %3365 = vset.pattern.permute.xlu0 0
        %3366 = vperm.xlu0 %3365, %v3358
        %v3367 = vpop.permute.xlu0 %3366
        %v3369 = vadd.f32 %v3353, %v3362
        %v3370 = vadd.f32 %v3354, %v3362
        %v3371 = vadd.f32 %v3355, %v3367
        %v3372 = vadd.f32 %v3356, %v3367
        %v3373 = vmax.f32 %v3369, 0.0
        %v3374 = vmax.f32 %v3370, 0.0
        %v3375 = vmax.f32 %v3371, 0.0
        %v3376 = vmax.f32 %v3372, 0.0
        %3377 = vst [vmem:[%s177] sm:$0xff] %v3373
        %3378 = vst [vmem:[%s177 + $0x8] sm:$0xff] %v3374
        %3379 = vst [vmem:[%s177 + $0x10] sm:$0xff] %v3375
        %3380 = vst [vmem:[%s177 + $0x18] sm:$0xff] %v3376
        %s3381 = sand.u32 %s107, 1
        %s3382 = scalar_lea.sflag [#allocation3], %s3381
        %s3383 = sand.u32 %s107, 1
        %s3384 = smul.addr %s3383, 32
        %s3385 = scalar_lea.vmem [#allocation2], %s3384
        // Predicated region
        $region33: #{tpu_custom_call.1} parent=31 // pred_check
          %p3386 = pneg %p117
        $region34: #{tpu_custom_call.1} parent=31 // pred_check_branch
          %3388 = sbr.rel (%p3386) target = $region36
        $region35: #{tpu_custom_call.1} parent=31 // pred_region
          %s3389 = smul.u32 2, %s22
          %s3391 = ssub.s32 512, 512
          %3392 = vsyncadd %s3382, %s3391
          %s3393 = smul.addr %s21, 4
          %s3394 = sadd.s32 %s3389, %s3393
          %s3395 = smul.addr %s3394, 128
          %s3396 = scalar_lea.hbm %s3, %s3395
          %s3397 = sshll.u32 %s3385, 4
          %s3398 = int_to_ptr.vmem [resolvable:$true] %s3397
          %3403 = dma.vmem_to_hbm [thread:$0]  %s3398, 512, %s3396, %s3382, 256, 256, 16
        $region36: #{tpu_custom_call.1} parent=31 // pred_fallthru
          _
      $region32: #{tpu_custom_call.1} parent=5 // pred_fallthru
        _
      %p3404 = scmp.le.s32.totalorder 2, %s12
      // Predicated region
      $region37: #{tpu_custom_call.1} parent=5 // pred_check
        %p3405 = pneg %p3404
      $region38: #{tpu_custom_call.1} parent=5 // pred_check_branch
        %3407 = sbr.rel (%p3405) target = $region40
      $region39: #{tpu_custom_call.1} parent=5 // pred_region
        %s3408 = ssub.s32 %s12, 2
        // Predicated region
        $region41: #{tpu_custom_call.1} parent=39 // pred_check
          %p3409 = pneg %p123
        $region42: #{tpu_custom_call.1} parent=39 // pred_check_branch
          %3411 = sbr.rel (%p3409) target = $region44
        $region43: #{tpu_custom_call.1} parent=39 // pred_region
          %s3412 = sand.u32 %s108, 1
          %s3413 = scalar_lea.sflag [#allocation3], %s3412
          %s3414 = sand.u32 %s108, 1
          %s3415 = smul.addr %s3414, 32
          %s3416 = scalar_lea.vmem [#allocation2], %s3415
          %3417 = dma.done %s3413, 512
        $region44: #{tpu_custom_call.1} parent=39 // pred_fallthru
          _
      $region40: #{tpu_custom_call.1} parent=5 // pred_fallthru
        _
    $region6: #{tpu_custom_call.1} parent=1 // loop_footer
      %s16 = sadd.s32 1, %s12
    $region7: #{tpu_custom_call.1} parent=1 // loop_footer_branch
      %11 = sbr.rel target = $region3
    $region8: #{tpu_custom_call.1} parent=1 // loop_exit
      _
    %3418 = vsyncpa [#allocation3], 1
    %s3419 = scalar_lea.sflag [#allocation3], 1
    %3420 = vsyncpa %s3419, 1

</llo_original>
